<compile_context>
chip_gen: v7x
topology: tpu7x:2x2x1
jax: 0.10.0
libtpu: 0.0.40
codegen_flags: <defaults>
</compile_context>

<pallas_src>
import jax
import jax.numpy as jnp
from jax.experimental import pallas as pl
from jax.experimental.pallas import tpu as pltpu

EMBED_DIM = 32      # 2**5
HIDDEN = 32         # 2**5
NUM_LAYERS = 2
VOCAB = 128         # synthetic len(dataset.vocab) == lane width


# ----------------------------- fused forward kernel --------------------------
def fused_forward_kernel(tok_ref, embproj1_ref, b1_ref, whh1_ref,
                         wih2_ref, b2_ref, whh2_ref,
                         wfc_ref, bfc_ref,
                         logits_ref, hn_ref, cn_ref):
    """One grid step == one batch element.

    tok_ref:      (1, T, 1) int32 tokens for this batch element.
    embproj1_ref: (V, 4H)  == embed @ W_ih1^T  (embedding fused with layer-1
                   input projection, precomputed host-side).
    b1/b2:        (1, 4H)  fused b_ih + b_hh per layer.
    whh1/whh2:    (H, 4H)  recurrent weights, pre-transposed.
    wfc/bfc:      (H, V) / (1, V) classifier.
    Outputs: logits (1, T, V), hn/cn (1, L, H)  (batch-major blocks).
    """
    T = tok_ref.shape[1]
    H = hn_ref.shape[-1]
    V = logits_ref.shape[-1]

    # --- embedding lookup + layer-1 input projection: ONE lane-dense matmul ---
    tok = tok_ref[0]                                              # (T, 1) int32
    lane_v = jax.lax.broadcasted_iota(jnp.int32, (T, V), 1)
    onehot = (lane_v == tok).astype(jnp.float32)                  # (T, V)
    # onehot @ (embed @ W_ih1^T) == embed[tok] @ W_ih1^T ; bias folded in.
    # (Also removes any OOB-token VMEM-read hazard: bad tokens -> zero row.)
    xproj1 = (jnp.dot(onehot, embproj1_ref[...],
                      preferred_element_type=jnp.float32) + b1_ref[...])  # (T,4H)

    # Gate band constants (PyTorch i,f,g,o layout on the 4H lane axis).
    lane4 = jax.lax.broadcasted_iota(jnp.int32, (1, 4 * H), 1)
    g_band = (lane4 >= 2 * H) & (lane4 < 3 * H)
    mult = jnp.where(g_band, 1.0, 0.5).astype(jnp.float32)   # 1 on g, 0.5 else
    addc = jnp.where(g_band, 0.0, 0.5).astype(jnp.float32)   # 0 on g, 0.5 else

    def lstm_cell(x_gates, h_prev, c_prev, whh):
        # Single recurrent matmul + single full-vreg tanh:
        #   sigmoid(x) = 0.5 * (1 + tanh(x / 2))  on the i/f/o bands.
        gates = x_gates + jnp.dot(h_prev, whh,
                                  preferred_element_type=jnp.float32)  # (1,4H)
        t = jnp.tanh(gates * mult)          # one EUP pass for all 4 gates
        act = t * mult + addc               # affine-correct the sigmoid bands
        i_g = act[:, 0 * H:1 * H]
        f_g = act[:, 1 * H:2 * H]
        g_g = act[:, 2 * H:3 * H]
        o_g = act[:, 3 * H:4 * H]
        c_new = f_g * c_prev + i_g * g_g
        h_new = o_g * jnp.tanh(c_new)
        return h_new, c_new

    zeros = jnp.zeros((1, H), jnp.float32)  # PyTorch zero init (h not passed)

    # ------------------------------- layer 1 ---------------------------------
    whh1 = whh1_ref[...]
    h1, c1 = zeros, zeros
    h1_seq = []
    for t in range(T):                       # fully unrolled serial recurrence
        h1, c1 = lstm_cell(xproj1[t:t + 1, :], h1, c1, whh1)
        h1_seq.append(h1)
    h1_all = jnp.concatenate(h1_seq, axis=0)                     # (T, H)

    # Layer-2 input projection for ALL timesteps in one matmul.
    xproj2 = (jnp.dot(h1_all, wih2_ref[...],
                      preferred_element_type=jnp.float32) + b2_ref[...])  # (T,4H)

    # ------------------------------- layer 2 ---------------------------------
    whh2 = whh2_ref[...]
    h2, c2 = zeros, zeros
    h2_seq = []
    for t in range(T):
        h2, c2 = lstm_cell(xproj2[t:t + 1, :], h2, c2, whh2)
        h2_seq.append(h2)
    h2_all = jnp.concatenate(h2_seq, axis=0)                     # (T, H)

    # Lane-dense (T, V=128) classifier matmul -> the only large HBM write.
    logits_ref[0] = (jnp.dot(h2_all, wfc_ref[...],
                             preferred_element_type=jnp.float32) + bfc_ref[...])

    # Final LSTM states (layer-major), written once.
    hn_ref[0] = jnp.concatenate([h1, h2], axis=0)                # (L, H)
    cn_ref[0] = jnp.concatenate([c1, c2], axis=0)


# ------------------------------ params / wrapper ------------------------------
def init_params(key):
    """Returns (kernel_params, raw_params).  kernel_params are pre-transposed /
    pre-fused so the forward path does zero per-call weight prep; raw_params
    keep the PyTorch-layout tensors for the pure-JAX reference check."""
    k = 1.0 / jnp.sqrt(jnp.float32(HIDDEN))
    keys = jax.random.split(key, 3 + 4 * NUM_LAYERS)
    embed = jax.random.normal(keys[0], (VOCAB, EMBED_DIM), jnp.float32) * 0.1
    fc_w = jax.random.uniform(keys[1], (VOCAB, HIDDEN), jnp.float32, -k, k)
    fc_b = jax.random.uniform(keys[2], (VOCAB,), jnp.float32, -k, k)

    layers = []
    for l in range(NUM_LAYERS):
        in_dim = EMBED_DIM if l == 0 else HIDDEN
        kk = keys[3 + 4 * l: 7 + 4 * l]
        w_ih = jax.random.uniform(kk[0], (4 * HIDDEN, in_dim), jnp.float32, -k, k)
        w_hh = jax.random.uniform(kk[1], (4 * HIDDEN, HIDDEN), jnp.float32, -k, k)
        b_ih = jax.random.uniform(kk[2], (4 * HIDDEN,), jnp.float32, -k, k)
        b_hh = jax.random.uniform(kk[3], (4 * HIDDEN,), jnp.float32, -k, k)
        layers.append((w_ih, w_hh, b_ih, b_hh))

    (w_ih1, w_hh1, b_ih1, b_hh1), (w_ih2, w_hh2, b_ih2, b_hh2) = layers
    kernel_params = {
        # Embedding lookup fused with layer-1 input projection:
        #   onehot(tok) @ (embed @ W_ih1^T)  ==  embed[tok] @ W_ih1^T
        "embproj1": jnp.dot(embed, jnp.transpose(w_ih1),
                            precision="highest"),                  # (V, 4H)
        "b1": (b_ih1 + b_hh1).reshape(1, 4 * HIDDEN),
        "whh1_t": jnp.transpose(w_hh1),                            # (H, 4H)
        "wih2_t": jnp.transpose(w_ih2),                            # (H, 4H)
        "b2": (b_ih2 + b_hh2).reshape(1, 4 * HIDDEN),
        "whh2_t": jnp.transpose(w_hh2),                            # (H, 4H)
        "fc_w_t": jnp.transpose(fc_w),                             # (H, V)
        "fc_b": fc_b.reshape(1, VOCAB),
    }
    raw_params = {"embed": embed, "layers": layers, "fc_w": fc_w, "fc_b": fc_b}
    return kernel_params, raw_params


def forward(params, tokens, h_unused):
    # h_unused mirrors the PyTorch signature: forward(x, h) ignores h.
    B, T = tokens.shape
    tok3d = tokens.astype(jnp.int32).reshape(B, T, 1)

    def full(shape):
        return pl.BlockSpec(shape, lambda b, _s=shape: (0,) * len(_s))

    logits, hn_blh, cn_blh = pl.pallas_call(
        fused_forward_kernel,
        out_shape=(jax.ShapeDtypeStruct((B, T, VOCAB), jnp.float32),
                   jax.ShapeDtypeStruct((B, NUM_LAYERS, HIDDEN), jnp.float32),
                   jax.ShapeDtypeStruct((B, NUM_LAYERS, HIDDEN), jnp.float32)),
        grid=(B,),
        in_specs=[pl.BlockSpec((1, T, 1), lambda b: (b, 0, 0)),   # tokens
                  full((VOCAB, 4 * HIDDEN)),                      # embed@W_ih1^T
                  full((1, 4 * HIDDEN)),                          # b1
                  full((HIDDEN, 4 * HIDDEN)),                     # W_hh1^T
                  full((HIDDEN, 4 * HIDDEN)),                     # W_ih2^T
                  full((1, 4 * HIDDEN)),                          # b2
                  full((HIDDEN, 4 * HIDDEN)),                     # W_hh2^T
                  full((HIDDEN, VOCAB)),                          # fc W^T
                  full((1, VOCAB))],                              # fc b
        out_specs=(pl.BlockSpec((1, T, VOCAB), lambda b: (b, 0, 0)),
                   pl.BlockSpec((1, NUM_LAYERS, HIDDEN), lambda b: (b, 0, 0)),
                   pl.BlockSpec((1, NUM_LAYERS, HIDDEN), lambda b: (b, 0, 0))),
        compiler_params=pltpu.CompilerParams(
            dimension_semantics=("parallel",)),    # v7x: one sequence per TC
    )(tok3d, params["embproj1"], params["b1"], params["whh1_t"],
      params["wih2_t"], params["b2"], params["whh2_t"],
      params["fc_w_t"], params["fc_b"])

    h_n = jnp.transpose(hn_blh, (1, 0, 2))          # (L, B, H), tiny transpose
    c_n = jnp.transpose(cn_blh, (1, 0, 2))
    return logits, (h_n, c_n)


# ------------------------- pure-JAX reference (PyTorch math) ------------------
def reference_forward(raw, tokens):
    B, T = tokens.shape
    x = raw["embed"][tokens]                                      # (B, T, E)
    inp = x
    h_n, c_n = [], []
    for (w_ih, w_hh, b_ih, b_hh) in raw["layers"]:
        h = jnp.zeros((B, HIDDEN), jnp.float32)
        c = jnp.zeros((B, HIDDEN), jnp.float32)
        outs = []
        for t in range(T):
            g = (jnp.dot(inp[:, t, :], w_ih.T, precision="highest")
                 + jnp.dot(h, w_hh.T, precision="highest") + b_ih + b_hh)
            i = jax.nn.sigmoid(g[:, 0 * HIDDEN:1 * HIDDEN])
            f = jax.nn.sigmoid(g[:, 1 * HIDDEN:2 * HIDDEN])
            gg = jnp.tanh(g[:, 2 * HIDDEN:3 * HIDDEN])
            o = jax.nn.sigmoid(g[:, 3 * HIDDEN:4 * HIDDEN])
            c = f * c + i * gg
            h = o * jnp.tanh(c)
            outs.append(h)
        inp = jnp.stack(outs, axis=1)                             # (B, T, H)
        h_n.append(h)
        c_n.append(c)
    logits = jnp.dot(inp, raw["fc_w"].T, precision="highest") + raw["fc_b"]
    return logits, (jnp.stack(h_n), jnp.stack(c_n))


if __name__ == "__main__":
    key = jax.random.PRNGKey(0)
    k_params, k_tok, k_h, k_c = jax.random.split(key, 4)

    B, T = 2, 8
    params, raw = init_params(k_params)
    tokens = jax.random.randint(k_tok, (B, T), 0, VOCAB, dtype=jnp.int32)
    # init_states equivalent (passed to forward but unused, matching PyTorch)
    h0 = (jax.random.normal(k_h, (NUM_LAYERS, B, HIDDEN), jnp.float32),
          jax.random.normal(k_c, (NUM_LAYERS, B, HIDDEN), jnp.float32))

    fwd = jax.jit(forward)
    logits, (h_n, c_n) = fwd(params, tokens, h0)
    jax.block_until_ready((logits, h_n, c_n))

    assert logits.shape == (B, T, VOCAB)
    assert h_n.shape == (NUM_LAYERS, B, HIDDEN)
    assert c_n.shape == (NUM_LAYERS, B, HIDDEN)

    ref_logits, (ref_h, ref_c) = reference_forward(raw, tokens)
    assert float(jnp.max(jnp.abs(logits - ref_logits))) < 5e-3
    assert float(jnp.max(jnp.abs(h_n - ref_h))) < 5e-3
    assert float(jnp.max(jnp.abs(c_n - ref_c))) < 5e-3

    print("KERNEL_OK")
</pallas_src>

<mosaic_0001>
module attributes {stable_mosaic.version = 11 : i64} {
  func.func @fused_forward_kernel(%arg0: i32, %arg1: memref<1x8x1xi32, #tpu.memory_space<vmem>>, %arg2: memref<128x128xf32, #tpu.memory_space<vmem>>, %arg3: memref<1x128xf32, #tpu.memory_space<vmem>>, %arg4: memref<32x128xf32, #tpu.memory_space<vmem>>, %arg5: memref<32x128xf32, #tpu.memory_space<vmem>>, %arg6: memref<1x128xf32, #tpu.memory_space<vmem>>, %arg7: memref<32x128xf32, #tpu.memory_space<vmem>>, %arg8: memref<32x128xf32, #tpu.memory_space<vmem>>, %arg9: memref<1x128xf32, #tpu.memory_space<vmem>>, %arg10: memref<1x8x128xf32, #tpu.memory_space<vmem>>, %arg11: memref<1x2x32xf32, #tpu.memory_space<vmem>>, %arg12: memref<1x2x32xf32, #tpu.memory_space<vmem>>) attributes {dimension_semantics = [#tpu.dimension_semantics<parallel>], iteration_bounds = array<i64: 2>, scalar_prefetch = 0 : i64, scratch_operands = 0 : i64, tpu.core_type = #tpu.core_type<tc>, window_params = [{transform_indices = @transform_0, window_bounds = array<i64: 1, 8, 1>}, {pipeline_mode = #tpu.pipeline_mode<synchronous>, transform_indices = @transform_1, window_bounds = array<i64: 128, 128>}, {pipeline_mode = #tpu.pipeline_mode<synchronous>, transform_indices = @transform_2, window_bounds = array<i64: 1, 128>}, {pipeline_mode = #tpu.pipeline_mode<synchronous>, transform_indices = @transform_3, window_bounds = array<i64: 32, 128>}, {pipeline_mode = #tpu.pipeline_mode<synchronous>, transform_indices = @transform_4, window_bounds = array<i64: 32, 128>}, {pipeline_mode = #tpu.pipeline_mode<synchronous>, transform_indices = @transform_5, window_bounds = array<i64: 1, 128>}, {pipeline_mode = #tpu.pipeline_mode<synchronous>, transform_indices = @transform_6, window_bounds = array<i64: 32, 128>}, {pipeline_mode = #tpu.pipeline_mode<synchronous>, transform_indices = @transform_7, window_bounds = array<i64: 32, 128>}, {pipeline_mode = #tpu.pipeline_mode<synchronous>, transform_indices = @transform_8, window_bounds = array<i64: 1, 128>}, {transform_indices = @transform_9, window_bounds = array<i64: 1, 8, 128>}, {transform_indices = @transform_10, window_bounds = array<i64: 1, 2, 32>}, {transform_indices = @transform_11, window_bounds = array<i64: 1, 2, 32>}]} {
    %c0 = arith.constant 0 : index
    %c0_0 = arith.constant 0 : index
    %c0_1 = arith.constant 0 : index
    %0 = vector.load %arg1[%c0, %c0_0, %c0_1] : memref<1x8x1xi32, #tpu.memory_space<vmem>>, vector<1x8x1xi32>
    %1 = vector.shape_cast %0 : vector<1x8x1xi32> to vector<8x1xi32>
    %2 = tpu.iota {dimensions = array<i32: 1>} : vector<8x128xi32>
    %3 = vector.broadcast %1 : vector<8x1xi32> to vector<8x128xi32>
    %4 = arith.cmpi eq, %2, %3 : vector<8x128xi32>
    %5 = arith.extui %4 : vector<8x128xi1> to vector<8x128xi32>
    %6 = arith.sitofp %5 : vector<8x128xi32> to vector<8x128xf32>
    %c0_2 = arith.constant 0 : index
    %c0_3 = arith.constant 0 : index
    %7 = vector.load %arg2[%c0_2, %c0_3] : memref<128x128xf32, #tpu.memory_space<vmem>>, vector<128x128xf32>
    %cst = arith.constant dense<0.000000e+00> : vector<8x128xf32>
    %8 = tpu.matmul %6, %7, %cst {dimension_numbers = #tpu.dot_dimension_numbers<[1], [0], [0], [1], [0, 0, 1, 1], [], []>} : vector<8x128xf32>, vector<128x128xf32>, vector<8x128xf32> -> vector<8x128xf32>
    %c0_4 = arith.constant 0 : index
    %c0_5 = arith.constant 0 : index
    %9 = vector.load %arg3[%c0_4, %c0_5] : memref<1x128xf32, #tpu.memory_space<vmem>>, vector<1x128xf32>
    %10 = vector.broadcast %9 : vector<1x128xf32> to vector<8x128xf32>
    %11 = arith.addf %8, %10 : vector<8x128xf32>
    %12 = tpu.iota {dimensions = array<i32: 1>} : vector<1x128xi32>
    %c64_i32 = arith.constant 64 : i32
    %13 = vector.broadcast %c64_i32 : i32 to vector<1x128xi32>
    %14 = arith.cmpi sge, %12, %13 : vector<1x128xi32>
    %c96_i32 = arith.constant 96 : i32
    %15 = vector.broadcast %c96_i32 : i32 to vector<1x128xi32>
    %16 = arith.cmpi slt, %12, %15 : vector<1x128xi32>
    %17 = arith.andi %14, %16 : vector<1x128xi1>
    %cst_6 = arith.constant 1.000000e+00 : f32
    %cst_7 = arith.constant 5.000000e-01 : f32
    %18 = vector.broadcast %cst_6 : f32 to vector<1x128xf32>
    %19 = vector.broadcast %cst_7 : f32 to vector<1x128xf32>
    %20 = arith.select %17, %18, %19 : vector<1x128xi1>, vector<1x128xf32>
    %cst_8 = arith.constant 0.000000e+00 : f32
    %cst_9 = arith.constant 5.000000e-01 : f32
    %21 = vector.broadcast %cst_8 : f32 to vector<1x128xf32>
    %22 = vector.broadcast %cst_9 : f32 to vector<1x128xf32>
    %23 = arith.select %17, %21, %22 : vector<1x128xi1>, vector<1x128xf32>
    %cst_10 = arith.constant 0.000000e+00 : f32
    %24 = vector.broadcast %cst_10 : f32 to vector<1x32xf32>
    %c0_11 = arith.constant 0 : index
    %c0_12 = arith.constant 0 : index
    %25 = vector.load %arg4[%c0_11, %c0_12] : memref<32x128xf32, #tpu.memory_space<vmem>>, vector<32x128xf32>
    %26 = vector.extract_strided_slice %11 {offsets = [0, 0], sizes = [1, 128], strides = [1, 1]} : vector<8x128xf32> to vector<1x128xf32>
    %cst_13 = arith.constant dense<0.000000e+00> : vector<1x128xf32>
    %27 = tpu.matmul %24, %25, %cst_13 {dimension_numbers = #tpu.dot_dimension_numbers<[1], [0], [0], [1], [0, 0, 1, 1], [], []>} : vector<1x32xf32>, vector<32x128xf32>, vector<1x128xf32> -> vector<1x128xf32>
    %28 = arith.addf %26, %27 : vector<1x128xf32>
    %29 = arith.mulf %28, %20 : vector<1x128xf32>
    %30 = math.tanh %29 : vector<1x128xf32>
    %31 = arith.mulf %30, %20 : vector<1x128xf32>
    %32 = arith.addf %31, %23 : vector<1x128xf32>
    %33 = vector.extract_strided_slice %32 {offsets = [0, 0], sizes = [1, 32], strides = [1, 1]} : vector<1x128xf32> to vector<1x32xf32>
    %34 = vector.extract_strided_slice %32 {offsets = [0, 32], sizes = [1, 32], strides = [1, 1]} : vector<1x128xf32> to vector<1x32xf32>
    %35 = vector.extract_strided_slice %32 {offsets = [0, 64], sizes = [1, 32], strides = [1, 1]} : vector<1x128xf32> to vector<1x32xf32>
    %36 = vector.extract_strided_slice %32 {offsets = [0, 96], sizes = [1, 32], strides = [1, 1]} : vector<1x128xf32> to vector<1x32xf32>
    %37 = arith.mulf %34, %24 : vector<1x32xf32>
    %38 = arith.mulf %33, %35 : vector<1x32xf32>
    %39 = arith.addf %37, %38 : vector<1x32xf32>
    %40 = math.tanh %39 : vector<1x32xf32>
    %41 = arith.mulf %36, %40 : vector<1x32xf32>
    %42 = vector.extract_strided_slice %11 {offsets = [1, 0], sizes = [1, 128], strides = [1, 1]} : vector<8x128xf32> to vector<1x128xf32>
    %cst_14 = arith.constant dense<0.000000e+00> : vector<1x128xf32>
    %43 = tpu.matmul %41, %25, %cst_14 {dimension_numbers = #tpu.dot_dimension_numbers<[1], [0], [0], [1], [0, 0, 1, 1], [], []>} : vector<1x32xf32>, vector<32x128xf32>, vector<1x128xf32> -> vector<1x128xf32>
    %44 = arith.addf %42, %43 : vector<1x128xf32>
    %45 = arith.mulf %44, %20 : vector<1x128xf32>
    %46 = math.tanh %45 : vector<1x128xf32>
    %47 = arith.mulf %46, %20 : vector<1x128xf32>
    %48 = arith.addf %47, %23 : vector<1x128xf32>
    %49 = vector.extract_strided_slice %48 {offsets = [0, 0], sizes = [1, 32], strides = [1, 1]} : vector<1x128xf32> to vector<1x32xf32>
    %50 = vector.extract_strided_slice %48 {offsets = [0, 32], sizes = [1, 32], strides = [1, 1]} : vector<1x128xf32> to vector<1x32xf32>
    %51 = vector.extract_strided_slice %48 {offsets = [0, 64], sizes = [1, 32], strides = [1, 1]} : vector<1x128xf32> to vector<1x32xf32>
    %52 = vector.extract_strided_slice %48 {offsets = [0, 96], sizes = [1, 32], strides = [1, 1]} : vector<1x128xf32> to vector<1x32xf32>
    %53 = arith.mulf %50, %39 : vector<1x32xf32>
    %54 = arith.mulf %49, %51 : vector<1x32xf32>
    %55 = arith.addf %53, %54 : vector<1x32xf32>
    %56 = math.tanh %55 : vector<1x32xf32>
    %57 = arith.mulf %52, %56 : vector<1x32xf32>
    %58 = vector.extract_strided_slice %11 {offsets = [2, 0], sizes = [1, 128], strides = [1, 1]} : vector<8x128xf32> to vector<1x128xf32>
    %cst_15 = arith.constant dense<0.000000e+00> : vector<1x128xf32>
    %59 = tpu.matmul %57, %25, %cst_15 {dimension_numbers = #tpu.dot_dimension_numbers<[1], [0], [0], [1], [0, 0, 1, 1], [], []>} : vector<1x32xf32>, vector<32x128xf32>, vector<1x128xf32> -> vector<1x128xf32>
    %60 = arith.addf %58, %59 : vector<1x128xf32>
    %61 = arith.mulf %60, %20 : vector<1x128xf32>
    %62 = math.tanh %61 : vector<1x128xf32>
    %63 = arith.mulf %62, %20 : vector<1x128xf32>
    %64 = arith.addf %63, %23 : vector<1x128xf32>
    %65 = vector.extract_strided_slice %64 {offsets = [0, 0], sizes = [1, 32], strides = [1, 1]} : vector<1x128xf32> to vector<1x32xf32>
    %66 = vector.extract_strided_slice %64 {offsets = [0, 32], sizes = [1, 32], strides = [1, 1]} : vector<1x128xf32> to vector<1x32xf32>
    %67 = vector.extract_strided_slice %64 {offsets = [0, 64], sizes = [1, 32], strides = [1, 1]} : vector<1x128xf32> to vector<1x32xf32>
    %68 = vector.extract_strided_slice %64 {offsets = [0, 96], sizes = [1, 32], strides = [1, 1]} : vector<1x128xf32> to vector<1x32xf32>
    %69 = arith.mulf %66, %55 : vector<1x32xf32>
    %70 = arith.mulf %65, %67 : vector<1x32xf32>
    %71 = arith.addf %69, %70 : vector<1x32xf32>
    %72 = math.tanh %71 : vector<1x32xf32>
    %73 = arith.mulf %68, %72 : vector<1x32xf32>
    %74 = vector.extract_strided_slice %11 {offsets = [3, 0], sizes = [1, 128], strides = [1, 1]} : vector<8x128xf32> to vector<1x128xf32>
    %cst_16 = arith.constant dense<0.000000e+00> : vector<1x128xf32>
    %75 = tpu.matmul %73, %25, %cst_16 {dimension_numbers = #tpu.dot_dimension_numbers<[1], [0], [0], [1], [0, 0, 1, 1], [], []>} : vector<1x32xf32>, vector<32x128xf32>, vector<1x128xf32> -> vector<1x128xf32>
    %76 = arith.addf %74, %75 : vector<1x128xf32>
    %77 = arith.mulf %76, %20 : vector<1x128xf32>
    %78 = math.tanh %77 : vector<1x128xf32>
    %79 = arith.mulf %78, %20 : vector<1x128xf32>
    %80 = arith.addf %79, %23 : vector<1x128xf32>
    %81 = vector.extract_strided_slice %80 {offsets = [0, 0], sizes = [1, 32], strides = [1, 1]} : vector<1x128xf32> to vector<1x32xf32>
    %82 = vector.extract_strided_slice %80 {offsets = [0, 32], sizes = [1, 32], strides = [1, 1]} : vector<1x128xf32> to vector<1x32xf32>
    %83 = vector.extract_strided_slice %80 {offsets = [0, 64], sizes = [1, 32], strides = [1, 1]} : vector<1x128xf32> to vector<1x32xf32>
    %84 = vector.extract_strided_slice %80 {offsets = [0, 96], sizes = [1, 32], strides = [1, 1]} : vector<1x128xf32> to vector<1x32xf32>
    %85 = arith.mulf %82, %71 : vector<1x32xf32>
    %86 = arith.mulf %81, %83 : vector<1x32xf32>
    %87 = arith.addf %85, %86 : vector<1x32xf32>
    %88 = math.tanh %87 : vector<1x32xf32>
    %89 = arith.mulf %84, %88 : vector<1x32xf32>
    %90 = vector.extract_strided_slice %11 {offsets = [4, 0], sizes = [1, 128], strides = [1, 1]} : vector<8x128xf32> to vector<1x128xf32>
    %cst_17 = arith.constant dense<0.000000e+00> : vector<1x128xf32>
    %91 = tpu.matmul %89, %25, %cst_17 {dimension_numbers = #tpu.dot_dimension_numbers<[1], [0], [0], [1], [0, 0, 1, 1], [], []>} : vector<1x32xf32>, vector<32x128xf32>, vector<1x128xf32> -> vector<1x128xf32>
    %92 = arith.addf %90, %91 : vector<1x128xf32>
    %93 = arith.mulf %92, %20 : vector<1x128xf32>
    %94 = math.tanh %93 : vector<1x128xf32>
    %95 = arith.mulf %94, %20 : vector<1x128xf32>
    %96 = arith.addf %95, %23 : vector<1x128xf32>
    %97 = vector.extract_strided_slice %96 {offsets = [0, 0], sizes = [1, 32], strides = [1, 1]} : vector<1x128xf32> to vector<1x32xf32>
    %98 = vector.extract_strided_slice %96 {offsets = [0, 32], sizes = [1, 32], strides = [1, 1]} : vector<1x128xf32> to vector<1x32xf32>
    %99 = vector.extract_strided_slice %96 {offsets = [0, 64], sizes = [1, 32], strides = [1, 1]} : vector<1x128xf32> to vector<1x32xf32>
    %100 = vector.extract_strided_slice %96 {offsets = [0, 96], sizes = [1, 32], strides = [1, 1]} : vector<1x128xf32> to vector<1x32xf32>
    %101 = arith.mulf %98, %87 : vector<1x32xf32>
    %102 = arith.mulf %97, %99 : vector<1x32xf32>
    %103 = arith.addf %101, %102 : vector<1x32xf32>
    %104 = math.tanh %103 : vector<1x32xf32>
    %105 = arith.mulf %100, %104 : vector<1x32xf32>
    %106 = vector.extract_strided_slice %11 {offsets = [5, 0], sizes = [1, 128], strides = [1, 1]} : vector<8x128xf32> to vector<1x128xf32>
    %cst_18 = arith.constant dense<0.000000e+00> : vector<1x128xf32>
    %107 = tpu.matmul %105, %25, %cst_18 {dimension_numbers = #tpu.dot_dimension_numbers<[1], [0], [0], [1], [0, 0, 1, 1], [], []>} : vector<1x32xf32>, vector<32x128xf32>, vector<1x128xf32> -> vector<1x128xf32>
    %108 = arith.addf %106, %107 : vector<1x128xf32>
    %109 = arith.mulf %108, %20 : vector<1x128xf32>
    %110 = math.tanh %109 : vector<1x128xf32>
    %111 = arith.mulf %110, %20 : vector<1x128xf32>
    %112 = arith.addf %111, %23 : vector<1x128xf32>
    %113 = vector.extract_strided_slice %112 {offsets = [0, 0], sizes = [1, 32], strides = [1, 1]} : vector<1x128xf32> to vector<1x32xf32>
    %114 = vector.extract_strided_slice %112 {offsets = [0, 32], sizes = [1, 32], strides = [1, 1]} : vector<1x128xf32> to vector<1x32xf32>
    %115 = vector.extract_strided_slice %112 {offsets = [0, 64], sizes = [1, 32], strides = [1, 1]} : vector<1x128xf32> to vector<1x32xf32>
    %116 = vector.extract_strided_slice %112 {offsets = [0, 96], sizes = [1, 32], strides = [1, 1]} : vector<1x128xf32> to vector<1x32xf32>
    %117 = arith.mulf %114, %103 : vector<1x32xf32>
    %118 = arith.mulf %113, %115 : vector<1x32xf32>
    %119 = arith.addf %117, %118 : vector<1x32xf32>
    %120 = math.tanh %119 : vector<1x32xf32>
    %121 = arith.mulf %116, %120 : vector<1x32xf32>
    %122 = vector.extract_strided_slice %11 {offsets = [6, 0], sizes = [1, 128], strides = [1, 1]} : vector<8x128xf32> to vector<1x128xf32>
    %cst_19 = arith.constant dense<0.000000e+00> : vector<1x128xf32>
    %123 = tpu.matmul %121, %25, %cst_19 {dimension_numbers = #tpu.dot_dimension_numbers<[1], [0], [0], [1], [0, 0, 1, 1], [], []>} : vector<1x32xf32>, vector<32x128xf32>, vector<1x128xf32> -> vector<1x128xf32>
    %124 = arith.addf %122, %123 : vector<1x128xf32>
    %125 = arith.mulf %124, %20 : vector<1x128xf32>
    %126 = math.tanh %125 : vector<1x128xf32>
    %127 = arith.mulf %126, %20 : vector<1x128xf32>
    %128 = arith.addf %127, %23 : vector<1x128xf32>
    %129 = vector.extract_strided_slice %128 {offsets = [0, 0], sizes = [1, 32], strides = [1, 1]} : vector<1x128xf32> to vector<1x32xf32>
    %130 = vector.extract_strided_slice %128 {offsets = [0, 32], sizes = [1, 32], strides = [1, 1]} : vector<1x128xf32> to vector<1x32xf32>
    %131 = vector.extract_strided_slice %128 {offsets = [0, 64], sizes = [1, 32], strides = [1, 1]} : vector<1x128xf32> to vector<1x32xf32>
    %132 = vector.extract_strided_slice %128 {offsets = [0, 96], sizes = [1, 32], strides = [1, 1]} : vector<1x128xf32> to vector<1x32xf32>
    %133 = arith.mulf %130, %119 : vector<1x32xf32>
    %134 = arith.mulf %129, %131 : vector<1x32xf32>
    %135 = arith.addf %133, %134 : vector<1x32xf32>
    %136 = math.tanh %135 : vector<1x32xf32>
    %137 = arith.mulf %132, %136 : vector<1x32xf32>
    %138 = vector.extract_strided_slice %11 {offsets = [7, 0], sizes = [1, 128], strides = [1, 1]} : vector<8x128xf32> to vector<1x128xf32>
    %cst_20 = arith.constant dense<0.000000e+00> : vector<1x128xf32>
    %139 = tpu.matmul %137, %25, %cst_20 {dimension_numbers = #tpu.dot_dimension_numbers<[1], [0], [0], [1], [0, 0, 1, 1], [], []>} : vector<1x32xf32>, vector<32x128xf32>, vector<1x128xf32> -> vector<1x128xf32>
    %140 = arith.addf %138, %139 : vector<1x128xf32>
    %141 = arith.mulf %140, %20 : vector<1x128xf32>
    %142 = math.tanh %141 : vector<1x128xf32>
    %143 = arith.mulf %142, %20 : vector<1x128xf32>
    %144 = arith.addf %143, %23 : vector<1x128xf32>
    %145 = vector.extract_strided_slice %144 {offsets = [0, 0], sizes = [1, 32], strides = [1, 1]} : vector<1x128xf32> to vector<1x32xf32>
    %146 = vector.extract_strided_slice %144 {offsets = [0, 32], sizes = [1, 32], strides = [1, 1]} : vector<1x128xf32> to vector<1x32xf32>
    %147 = vector.extract_strided_slice %144 {offsets = [0, 64], sizes = [1, 32], strides = [1, 1]} : vector<1x128xf32> to vector<1x32xf32>
    %148 = vector.extract_strided_slice %144 {offsets = [0, 96], sizes = [1, 32], strides = [1, 1]} : vector<1x128xf32> to vector<1x32xf32>
    %149 = arith.mulf %146, %135 : vector<1x32xf32>
    %150 = arith.mulf %145, %147 : vector<1x32xf32>
    %151 = arith.addf %149, %150 : vector<1x32xf32>
    %152 = math.tanh %151 : vector<1x32xf32>
    %153 = arith.mulf %148, %152 : vector<1x32xf32>
    %154 = tpu.concatenate %41, %57, %73, %89, %105, %121, %137, %153 in 0 : vector<1x32xf32>, vector<1x32xf32>, vector<1x32xf32>, vector<1x32xf32>, vector<1x32xf32>, vector<1x32xf32>, vector<1x32xf32>, vector<1x32xf32> -> vector<8x32xf32>
    %c0_21 = arith.constant 0 : index
    %c0_22 = arith.constant 0 : index
    %155 = vector.load %arg5[%c0_21, %c0_22] : memref<32x128xf32, #tpu.memory_space<vmem>>, vector<32x128xf32>
    %cst_23 = arith.constant dense<0.000000e+00> : vector<8x128xf32>
    %156 = tpu.matmul %154, %155, %cst_23 {dimension_numbers = #tpu.dot_dimension_numbers<[1], [0], [0], [1], [0, 0, 1, 1], [], []>} : vector<8x32xf32>, vector<32x128xf32>, vector<8x128xf32> -> vector<8x128xf32>
    %c0_24 = arith.constant 0 : index
    %c0_25 = arith.constant 0 : index
    %157 = vector.load %arg6[%c0_24, %c0_25] : memref<1x128xf32, #tpu.memory_space<vmem>>, vector<1x128xf32>
    %158 = vector.broadcast %157 : vector<1x128xf32> to vector<8x128xf32>
    %159 = arith.addf %156, %158 : vector<8x128xf32>
    %c0_26 = arith.constant 0 : index
    %c0_27 = arith.constant 0 : index
    %160 = vector.load %arg7[%c0_26, %c0_27] : memref<32x128xf32, #tpu.memory_space<vmem>>, vector<32x128xf32>
    %161 = vector.extract_strided_slice %159 {offsets = [0, 0], sizes = [1, 128], strides = [1, 1]} : vector<8x128xf32> to vector<1x128xf32>
    %cst_28 = arith.constant dense<0.000000e+00> : vector<1x128xf32>
    %162 = tpu.matmul %24, %160, %cst_28 {dimension_numbers = #tpu.dot_dimension_numbers<[1], [0], [0], [1], [0, 0, 1, 1], [], []>} : vector<1x32xf32>, vector<32x128xf32>, vector<1x128xf32> -> vector<1x128xf32>
    %163 = arith.addf %161, %162 : vector<1x128xf32>
    %164 = arith.mulf %163, %20 : vector<1x128xf32>
    %165 = math.tanh %164 : vector<1x128xf32>
    %166 = arith.mulf %165, %20 : vector<1x128xf32>
    %167 = arith.addf %166, %23 : vector<1x128xf32>
    %168 = vector.extract_strided_slice %167 {offsets = [0, 0], sizes = [1, 32], strides = [1, 1]} : vector<1x128xf32> to vector<1x32xf32>
    %169 = vector.extract_strided_slice %167 {offsets = [0, 32], sizes = [1, 32], strides = [1, 1]} : vector<1x128xf32> to vector<1x32xf32>
    %170 = vector.extract_strided_slice %167 {offsets = [0, 64], sizes = [1, 32], strides = [1, 1]} : vector<1x128xf32> to vector<1x32xf32>
    %171 = vector.extract_strided_slice %167 {offsets = [0, 96], sizes = [1, 32], strides = [1, 1]} : vector<1x128xf32> to vector<1x32xf32>
    %172 = arith.mulf %169, %24 : vector<1x32xf32>
    %173 = arith.mulf %168, %170 : vector<1x32xf32>
    %174 = arith.addf %172, %173 : vector<1x32xf32>
    %175 = math.tanh %174 : vector<1x32xf32>
    %176 = arith.mulf %171, %175 : vector<1x32xf32>
    %177 = vector.extract_strided_slice %159 {offsets = [1, 0], sizes = [1, 128], strides = [1, 1]} : vector<8x128xf32> to vector<1x128xf32>
    %cst_29 = arith.constant dense<0.000000e+00> : vector<1x128xf32>
    %178 = tpu.matmul %176, %160, %cst_29 {dimension_numbers = #tpu.dot_dimension_numbers<[1], [0], [0], [1], [0, 0, 1, 1], [], []>} : vector<1x32xf32>, vector<32x128xf32>, vector<1x128xf32> -> vector<1x128xf32>
    %179 = arith.addf %177, %178 : vector<1x128xf32>
    %180 = arith.mulf %179, %20 : vector<1x128xf32>
    %181 = math.tanh %180 : vector<1x128xf32>
    %182 = arith.mulf %181, %20 : vector<1x128xf32>
    %183 = arith.addf %182, %23 : vector<1x128xf32>
    %184 = vector.extract_strided_slice %183 {offsets = [0, 0], sizes = [1, 32], strides = [1, 1]} : vector<1x128xf32> to vector<1x32xf32>
    %185 = vector.extract_strided_slice %183 {offsets = [0, 32], sizes = [1, 32], strides = [1, 1]} : vector<1x128xf32> to vector<1x32xf32>
    %186 = vector.extract_strided_slice %183 {offsets = [0, 64], sizes = [1, 32], strides = [1, 1]} : vector<1x128xf32> to vector<1x32xf32>
    %187 = vector.extract_strided_slice %183 {offsets = [0, 96], sizes = [1, 32], strides = [1, 1]} : vector<1x128xf32> to vector<1x32xf32>
    %188 = arith.mulf %185, %174 : vector<1x32xf32>
    %189 = arith.mulf %184, %186 : vector<1x32xf32>
    %190 = arith.addf %188, %189 : vector<1x32xf32>
    %191 = math.tanh %190 : vector<1x32xf32>
    %192 = arith.mulf %187, %191 : vector<1x32xf32>
    %193 = vector.extract_strided_slice %159 {offsets = [2, 0], sizes = [1, 128], strides = [1, 1]} : vector<8x128xf32> to vector<1x128xf32>
    %cst_30 = arith.constant dense<0.000000e+00> : vector<1x128xf32>
    %194 = tpu.matmul %192, %160, %cst_30 {dimension_numbers = #tpu.dot_dimension_numbers<[1], [0], [0], [1], [0, 0, 1, 1], [], []>} : vector<1x32xf32>, vector<32x128xf32>, vector<1x128xf32> -> vector<1x128xf32>
    %195 = arith.addf %193, %194 : vector<1x128xf32>
    %196 = arith.mulf %195, %20 : vector<1x128xf32>
    %197 = math.tanh %196 : vector<1x128xf32>
    %198 = arith.mulf %197, %20 : vector<1x128xf32>
    %199 = arith.addf %198, %23 : vector<1x128xf32>
    %200 = vector.extract_strided_slice %199 {offsets = [0, 0], sizes = [1, 32], strides = [1, 1]} : vector<1x128xf32> to vector<1x32xf32>
    %201 = vector.extract_strided_slice %199 {offsets = [0, 32], sizes = [1, 32], strides = [1, 1]} : vector<1x128xf32> to vector<1x32xf32>
    %202 = vector.extract_strided_slice %199 {offsets = [0, 64], sizes = [1, 32], strides = [1, 1]} : vector<1x128xf32> to vector<1x32xf32>
    %203 = vector.extract_strided_slice %199 {offsets = [0, 96], sizes = [1, 32], strides = [1, 1]} : vector<1x128xf32> to vector<1x32xf32>
    %204 = arith.mulf %201, %190 : vector<1x32xf32>
    %205 = arith.mulf %200, %202 : vector<1x32xf32>
    %206 = arith.addf %204, %205 : vector<1x32xf32>
    %207 = math.tanh %206 : vector<1x32xf32>
    %208 = arith.mulf %203, %207 : vector<1x32xf32>
    %209 = vector.extract_strided_slice %159 {offsets = [3, 0], sizes = [1, 128], strides = [1, 1]} : vector<8x128xf32> to vector<1x128xf32>
    %cst_31 = arith.constant dense<0.000000e+00> : vector<1x128xf32>
    %210 = tpu.matmul %208, %160, %cst_31 {dimension_numbers = #tpu.dot_dimension_numbers<[1], [0], [0], [1], [0, 0, 1, 1], [], []>} : vector<1x32xf32>, vector<32x128xf32>, vector<1x128xf32> -> vector<1x128xf32>
    %211 = arith.addf %209, %210 : vector<1x128xf32>
    %212 = arith.mulf %211, %20 : vector<1x128xf32>
    %213 = math.tanh %212 : vector<1x128xf32>
    %214 = arith.mulf %213, %20 : vector<1x128xf32>
    %215 = arith.addf %214, %23 : vector<1x128xf32>
    %216 = vector.extract_strided_slice %215 {offsets = [0, 0], sizes = [1, 32], strides = [1, 1]} : vector<1x128xf32> to vector<1x32xf32>
    %217 = vector.extract_strided_slice %215 {offsets = [0, 32], sizes = [1, 32], strides = [1, 1]} : vector<1x128xf32> to vector<1x32xf32>
    %218 = vector.extract_strided_slice %215 {offsets = [0, 64], sizes = [1, 32], strides = [1, 1]} : vector<1x128xf32> to vector<1x32xf32>
    %219 = vector.extract_strided_slice %215 {offsets = [0, 96], sizes = [1, 32], strides = [1, 1]} : vector<1x128xf32> to vector<1x32xf32>
    %220 = arith.mulf %217, %206 : vector<1x32xf32>
    %221 = arith.mulf %216, %218 : vector<1x32xf32>
    %222 = arith.addf %220, %221 : vector<1x32xf32>
    %223 = math.tanh %222 : vector<1x32xf32>
    %224 = arith.mulf %219, %223 : vector<1x32xf32>
    %225 = vector.extract_strided_slice %159 {offsets = [4, 0], sizes = [1, 128], strides = [1, 1]} : vector<8x128xf32> to vector<1x128xf32>
    %cst_32 = arith.constant dense<0.000000e+00> : vector<1x128xf32>
    %226 = tpu.matmul %224, %160, %cst_32 {dimension_numbers = #tpu.dot_dimension_numbers<[1], [0], [0], [1], [0, 0, 1, 1], [], []>} : vector<1x32xf32>, vector<32x128xf32>, vector<1x128xf32> -> vector<1x128xf32>
    %227 = arith.addf %225, %226 : vector<1x128xf32>
    %228 = arith.mulf %227, %20 : vector<1x128xf32>
    %229 = math.tanh %228 : vector<1x128xf32>
    %230 = arith.mulf %229, %20 : vector<1x128xf32>
    %231 = arith.addf %230, %23 : vector<1x128xf32>
    %232 = vector.extract_strided_slice %231 {offsets = [0, 0], sizes = [1, 32], strides = [1, 1]} : vector<1x128xf32> to vector<1x32xf32>
    %233 = vector.extract_strided_slice %231 {offsets = [0, 32], sizes = [1, 32], strides = [1, 1]} : vector<1x128xf32> to vector<1x32xf32>
    %234 = vector.extract_strided_slice %231 {offsets = [0, 64], sizes = [1, 32], strides = [1, 1]} : vector<1x128xf32> to vector<1x32xf32>
    %235 = vector.extract_strided_slice %231 {offsets = [0, 96], sizes = [1, 32], strides = [1, 1]} : vector<1x128xf32> to vector<1x32xf32>
    %236 = arith.mulf %233, %222 : vector<1x32xf32>
    %237 = arith.mulf %232, %234 : vector<1x32xf32>
    %238 = arith.addf %236, %237 : vector<1x32xf32>
    %239 = math.tanh %238 : vector<1x32xf32>
    %240 = arith.mulf %235, %239 : vector<1x32xf32>
    %241 = vector.extract_strided_slice %159 {offsets = [5, 0], sizes = [1, 128], strides = [1, 1]} : vector<8x128xf32> to vector<1x128xf32>
    %cst_33 = arith.constant dense<0.000000e+00> : vector<1x128xf32>
    %242 = tpu.matmul %240, %160, %cst_33 {dimension_numbers = #tpu.dot_dimension_numbers<[1], [0], [0], [1], [0, 0, 1, 1], [], []>} : vector<1x32xf32>, vector<32x128xf32>, vector<1x128xf32> -> vector<1x128xf32>
    %243 = arith.addf %241, %242 : vector<1x128xf32>
    %244 = arith.mulf %243, %20 : vector<1x128xf32>
    %245 = math.tanh %244 : vector<1x128xf32>
    %246 = arith.mulf %245, %20 : vector<1x128xf32>
    %247 = arith.addf %246, %23 : vector<1x128xf32>
    %248 = vector.extract_strided_slice %247 {offsets = [0, 0], sizes = [1, 32], strides = [1, 1]} : vector<1x128xf32> to vector<1x32xf32>
    %249 = vector.extract_strided_slice %247 {offsets = [0, 32], sizes = [1, 32], strides = [1, 1]} : vector<1x128xf32> to vector<1x32xf32>
    %250 = vector.extract_strided_slice %247 {offsets = [0, 64], sizes = [1, 32], strides = [1, 1]} : vector<1x128xf32> to vector<1x32xf32>
    %251 = vector.extract_strided_slice %247 {offsets = [0, 96], sizes = [1, 32], strides = [1, 1]} : vector<1x128xf32> to vector<1x32xf32>
    %252 = arith.mulf %249, %238 : vector<1x32xf32>
    %253 = arith.mulf %248, %250 : vector<1x32xf32>
    %254 = arith.addf %252, %253 : vector<1x32xf32>
    %255 = math.tanh %254 : vector<1x32xf32>
    %256 = arith.mulf %251, %255 : vector<1x32xf32>
    %257 = vector.extract_strided_slice %159 {offsets = [6, 0], sizes = [1, 128], strides = [1, 1]} : vector<8x128xf32> to vector<1x128xf32>
    %cst_34 = arith.constant dense<0.000000e+00> : vector<1x128xf32>
    %258 = tpu.matmul %256, %160, %cst_34 {dimension_numbers = #tpu.dot_dimension_numbers<[1], [0], [0], [1], [0, 0, 1, 1], [], []>} : vector<1x32xf32>, vector<32x128xf32>, vector<1x128xf32> -> vector<1x128xf32>
    %259 = arith.addf %257, %258 : vector<1x128xf32>
    %260 = arith.mulf %259, %20 : vector<1x128xf32>
    %261 = math.tanh %260 : vector<1x128xf32>
    %262 = arith.mulf %261, %20 : vector<1x128xf32>
    %263 = arith.addf %262, %23 : vector<1x128xf32>
    %264 = vector.extract_strided_slice %263 {offsets = [0, 0], sizes = [1, 32], strides = [1, 1]} : vector<1x128xf32> to vector<1x32xf32>
    %265 = vector.extract_strided_slice %263 {offsets = [0, 32], sizes = [1, 32], strides = [1, 1]} : vector<1x128xf32> to vector<1x32xf32>
    %266 = vector.extract_strided_slice %263 {offsets = [0, 64], sizes = [1, 32], strides = [1, 1]} : vector<1x128xf32> to vector<1x32xf32>
    %267 = vector.extract_strided_slice %263 {offsets = [0, 96], sizes = [1, 32], strides = [1, 1]} : vector<1x128xf32> to vector<1x32xf32>
    %268 = arith.mulf %265, %254 : vector<1x32xf32>
    %269 = arith.mulf %264, %266 : vector<1x32xf32>
    %270 = arith.addf %268, %269 : vector<1x32xf32>
    %271 = math.tanh %270 : vector<1x32xf32>
    %272 = arith.mulf %267, %271 : vector<1x32xf32>
    %273 = vector.extract_strided_slice %159 {offsets = [7, 0], sizes = [1, 128], strides = [1, 1]} : vector<8x128xf32> to vector<1x128xf32>
    %cst_35 = arith.constant dense<0.000000e+00> : vector<1x128xf32>
    %274 = tpu.matmul %272, %160, %cst_35 {dimension_numbers = #tpu.dot_dimension_numbers<[1], [0], [0], [1], [0, 0, 1, 1], [], []>} : vector<1x32xf32>, vector<32x128xf32>, vector<1x128xf32> -> vector<1x128xf32>
    %275 = arith.addf %273, %274 : vector<1x128xf32>
    %276 = arith.mulf %275, %20 : vector<1x128xf32>
    %277 = math.tanh %276 : vector<1x128xf32>
    %278 = arith.mulf %277, %20 : vector<1x128xf32>
    %279 = arith.addf %278, %23 : vector<1x128xf32>
    %280 = vector.extract_strided_slice %279 {offsets = [0, 0], sizes = [1, 32], strides = [1, 1]} : vector<1x128xf32> to vector<1x32xf32>
    %281 = vector.extract_strided_slice %279 {offsets = [0, 32], sizes = [1, 32], strides = [1, 1]} : vector<1x128xf32> to vector<1x32xf32>
    %282 = vector.extract_strided_slice %279 {offsets = [0, 64], sizes = [1, 32], strides = [1, 1]} : vector<1x128xf32> to vector<1x32xf32>
    %283 = vector.extract_strided_slice %279 {offsets = [0, 96], sizes = [1, 32], strides = [1, 1]} : vector<1x128xf32> to vector<1x32xf32>
    %284 = arith.mulf %281, %270 : vector<1x32xf32>
    %285 = arith.mulf %280, %282 : vector<1x32xf32>
    %286 = arith.addf %284, %285 : vector<1x32xf32>
    %287 = math.tanh %286 : vector<1x32xf32>
    %288 = arith.mulf %283, %287 : vector<1x32xf32>
    %289 = tpu.concatenate %176, %192, %208, %224, %240, %256, %272, %288 in 0 : vector<1x32xf32>, vector<1x32xf32>, vector<1x32xf32>, vector<1x32xf32>, vector<1x32xf32>, vector<1x32xf32>, vector<1x32xf32>, vector<1x32xf32> -> vector<8x32xf32>
    %c0_36 = arith.constant 0 : index
    %c0_37 = arith.constant 0 : index
    %290 = vector.load %arg8[%c0_36, %c0_37] : memref<32x128xf32, #tpu.memory_space<vmem>>, vector<32x128xf32>
    %cst_38 = arith.constant dense<0.000000e+00> : vector<8x128xf32>
    %291 = tpu.matmul %289, %290, %cst_38 {dimension_numbers = #tpu.dot_dimension_numbers<[1], [0], [0], [1], [0, 0, 1, 1], [], []>} : vector<8x32xf32>, vector<32x128xf32>, vector<8x128xf32> -> vector<8x128xf32>
    %c0_39 = arith.constant 0 : index
    %c0_40 = arith.constant 0 : index
    %292 = vector.load %arg9[%c0_39, %c0_40] : memref<1x128xf32, #tpu.memory_space<vmem>>, vector<1x128xf32>
    %293 = vector.broadcast %292 : vector<1x128xf32> to vector<8x128xf32>
    %294 = arith.addf %291, %293 : vector<8x128xf32>
    %c0_41 = arith.constant 0 : index
    %c0_42 = arith.constant 0 : index
    %c0_43 = arith.constant 0 : index
    %295 = vector.load %arg10[%c0_41, %c0_42, %c0_43] : memref<1x8x128xf32, #tpu.memory_space<vmem>>, vector<1x8x128xf32>
    %296 = vector.shape_cast %295 : vector<1x8x128xf32> to vector<8x128xf32>
    %297 = vector.shape_cast %294 : vector<8x128xf32> to vector<1x8x128xf32>
    tpu.vector_store %arg10[%c0_41, %c0_42, %c0_43], %297 {strides = array<i32>} : memref<1x8x128xf32, #tpu.memory_space<vmem>>, vector<1x8x128xf32>,
    %298 = tpu.concatenate %153, %288 in 0 : vector<1x32xf32>, vector<1x32xf32> -> vector<2x32xf32>
    %c0_44 = arith.constant 0 : index
    %c0_45 = arith.constant 0 : index
    %c0_46 = arith.constant 0 : index
    %299 = vector.load %arg11[%c0_44, %c0_45, %c0_46] : memref<1x2x32xf32, #tpu.memory_space<vmem>>, vector<1x2x32xf32>
    %300 = vector.shape_cast %299 : vector<1x2x32xf32> to vector<2x32xf32>
    %301 = vector.shape_cast %298 : vector<2x32xf32> to vector<1x2x32xf32>
    tpu.vector_store %arg11[%c0_44, %c0_45, %c0_46], %301 {strides = array<i32>} : memref<1x2x32xf32, #tpu.memory_space<vmem>>, vector<1x2x32xf32>,
    %302 = tpu.concatenate %151, %286 in 0 : vector<1x32xf32>, vector<1x32xf32> -> vector<2x32xf32>
    %c0_47 = arith.constant 0 : index
    %c0_48 = arith.constant 0 : index
    %c0_49 = arith.constant 0 : index
    %303 = vector.load %arg12[%c0_47, %c0_48, %c0_49] : memref<1x2x32xf32, #tpu.memory_space<vmem>>, vector<1x2x32xf32>
    %304 = vector.shape_cast %303 : vector<1x2x32xf32> to vector<2x32xf32>
    %305 = vector.shape_cast %302 : vector<2x32xf32> to vector<1x2x32xf32>
    tpu.vector_store %arg12[%c0_47, %c0_48, %c0_49], %305 {strides = array<i32>} : memref<1x2x32xf32, #tpu.memory_space<vmem>>, vector<1x2x32xf32>,
    return
  }
  func.func @transform_0(%arg0: i32) -> (i32, i32, i32) {
    %c0_i32 = arith.constant 0 : i32
    %c0_i32_0 = arith.constant 0 : i32
    %c0_i32_1 = arith.constant 0 : i32
    return %arg0, %c0_i32, %c0_i32_0 : i32, i32, i32
  }
  func.func @transform_1(%arg0: i32) -> (i32, i32) {
    %c0_i32 = arith.constant 0 : i32
    %c0_i32_0 = arith.constant 0 : i32
    %c0_i32_1 = arith.constant 0 : i32
    return %c0_i32, %c0_i32_0 : i32, i32
  }
  func.func @transform_2(%arg0: i32) -> (i32, i32) {
    %c0_i32 = arith.constant 0 : i32
    %c0_i32_0 = arith.constant 0 : i32
    %c0_i32_1 = arith.constant 0 : i32
    return %c0_i32, %c0_i32_0 : i32, i32
  }
  func.func @transform_3(%arg0: i32) -> (i32, i32) {
    %c0_i32 = arith.constant 0 : i32
    %c0_i32_0 = arith.constant 0 : i32
    %c0_i32_1 = arith.constant 0 : i32
    return %c0_i32, %c0_i32_0 : i32, i32
  }
  func.func @transform_4(%arg0: i32) -> (i32, i32) {
    %c0_i32 = arith.constant 0 : i32
    %c0_i32_0 = arith.constant 0 : i32
    %c0_i32_1 = arith.constant 0 : i32
    return %c0_i32, %c0_i32_0 : i32, i32
  }
  func.func @transform_5(%arg0: i32) -> (i32, i32) {
    %c0_i32 = arith.constant 0 : i32
    %c0_i32_0 = arith.constant 0 : i32
    %c0_i32_1 = arith.constant 0 : i32
    return %c0_i32, %c0_i32_0 : i32, i32
  }
  func.func @transform_6(%arg0: i32) -> (i32, i32) {
    %c0_i32 = arith.constant 0 : i32
    %c0_i32_0 = arith.constant 0 : i32
    %c0_i32_1 = arith.constant 0 : i32
    return %c0_i32, %c0_i32_0 : i32, i32
  }
  func.func @transform_7(%arg0: i32) -> (i32, i32) {
    %c0_i32 = arith.constant 0 : i32
    %c0_i32_0 = arith.constant 0 : i32
    %c0_i32_1 = arith.constant 0 : i32
    return %c0_i32, %c0_i32_0 : i32, i32
  }
  func.func @transform_8(%arg0: i32) -> (i32, i32) {
    %c0_i32 = arith.constant 0 : i32
    %c0_i32_0 = arith.constant 0 : i32
    %c0_i32_1 = arith.constant 0 : i32
    return %c0_i32, %c0_i32_0 : i32, i32
  }
  func.func @transform_9(%arg0: i32) -> (i32, i32, i32) {
    %c0_i32 = arith.constant 0 : i32
    %c0_i32_0 = arith.constant 0 : i32
    %c0_i32_1 = arith.constant 0 : i32
    return %arg0, %c0_i32, %c0_i32_0 : i32, i32, i32
  }
  func.func @transform_10(%arg0: i32) -> (i32, i32, i32) {
    %c0_i32 = arith.constant 0 : i32
    %c0_i32_0 = arith.constant 0 : i32
    %c0_i32_1 = arith.constant 0 : i32
    return %arg0, %c0_i32, %c0_i32_0 : i32, i32, i32
  }
  func.func @transform_11(%arg0: i32) -> (i32, i32, i32) {
    %c0_i32 = arith.constant 0 : i32
    %c0_i32_0 = arith.constant 0 : i32
    %c0_i32_1 = arith.constant 0 : i32
    return %arg0, %c0_i32, %c0_i32_0 : i32, i32, i32
  }
}

</mosaic_0001>

<llo_original>
// kernel: forward.1
$region0: #{forward.1}
  #allocation0 [shape = 'u32[]', space=smem, size = 0x4, offset = 0x4, fixed_abs, tag = 'smem constant byte address 0x4 - core index']
  #allocation1 [shape = 'u32[144,128]{1,0:T(1,128)}', space=vmem, size = 0x12000, scoped, tag = 'internal scratch']
  %s0 = inlined_call_operand.vmem [shape: s32[2,8,1], index: 0, kind: input, shape index: {}]
  %s1 = inlined_call_operand.hbm [shape: f32[128,128], index: 1, kind: input, shape index: {}]
  %s2 = inlined_call_operand.vmem [shape: f32[1,128], index: 2, kind: input, shape index: {}]
  %s3 = inlined_call_operand.vmem [shape: f32[32,128], index: 3, kind: input, shape index: {}]
  %s4 = inlined_call_operand.hbm [shape: f32[32,128], index: 4, kind: input, shape index: {}]
  %s5 = inlined_call_operand.vmem [shape: f32[1,128], index: 5, kind: input, shape index: {}]
  %s6 = inlined_call_operand.hbm [shape: f32[32,128], index: 6, kind: input, shape index: {}]
  %s7 = inlined_call_operand.hbm [shape: f32[32,128], index: 7, kind: input, shape index: {}]
  %s8 = inlined_call_operand.vmem [shape: f32[1,128], index: 8, kind: input, shape index: {}]
  %s9 = inlined_call_operand.hbm [shape: f32[2,8,128], index: 9, kind: output, shape index: {0}]
  %s10 = inlined_call_operand.vmem [shape: f32[2,2,32], index: 10, kind: output, shape index: {1}]
  %s11 = inlined_call_operand.vmem [shape: f32[2,2,32], index: 11, kind: output, shape index: {2}]
  %12 = xla_tuple %s9, %s10, %s11
  %s13 = sld [smem:[#allocation0]]
  $region101: #{forward.1} parent=0
    _
  %s15 = ssub.s32 1, %s13
  %s16 = scalar_select 0, %s15, %s13
  $region1: #{forward.1} parent=0
    #allocation2 [shape = 'u8[65536]{0}', space=vmem, size = 0x10000, scoped, tag = 'input window, operand 1, single buffered']
    #allocation3 [shape = 's32[2]{0}', space=sflag, size = 0x8, scoped, tag = 'scoped memory for forward.1']
    #allocation4 [shape = 's32[2]{0}', space=sflag, size = 0x8, scoped, tag = 'scoped memory for forward.1']
    #allocation5 [shape = 'u8[16384]{0}', space=vmem, size = 0x4000, scoped, tag = 'input window, operand 4, single buffered']
    #allocation6 [shape = 's32[1]{0}', space=sflag, size = 0x4, scoped, tag = 'scoped memory for forward.1']
    #allocation7 [shape = 'u8[16384]{0}', space=vmem, size = 0x4000, scoped, tag = 'input window, operand 6, single buffered']
    #allocation8 [shape = 'u8[16384]{0}', space=vmem, size = 0x4000, scoped, tag = 'input window, operand 7, single buffered']
    #allocation9 [shape = 's32[1]{0}', space=sflag, size = 0x4, scoped, tag = 'scoped memory for forward.1']
    #allocation10 [shape = 'u8[8192]{0}', space=vmem, size = 0x2000, scoped, tag = 'output window, operand 0']
    %17 = vsyncpa [#allocation3], 0
    %18 = vsyncpa [#allocation6], 0
    %19 = vsyncpa [#allocation9], 0
    %20 = vsyncpa [#allocation4], 0
    %s21 = scalar_lea.sflag [#allocation4], 1
    %22 = vsyncpa %s21, 0
    loop: start=0, step=1, limit=4
    $region2: #{forward.1} parent=1 // loop_pre_header
      _
    $region3: #{forward.1} parent=1 // loop_header
      %s24 = sphi 0, %s28
      %p25 = scmp.ge.s32.totalorder %s24, 4
      %s34 = sphi 0, %s36
      %s37 = sphi 0, %s34
      %s38 = sphi 0, %s37
      %s54 = sphi 0, %s38
      %s58 = sphi 0, %s58
      %s60 = sphi 0, %s58
      %s61 = sphi 0, %s60
      %s75 = sphi 0, %s61
      %s79 = sphi 0, %s79
      %s81 = sphi 0, %s79
      %s82 = sphi 0, %s81
      %s96 = sphi 0, %s82
      %s100 = sphi 0, %s100
      %s102 = sphi 0, %s100
      %s103 = sphi 0, %s102
      %s117 = sphi 0, %s103
      %s121 = sphi 0, %s121
      %s123 = sphi 0, %s121
      %s124 = sphi 0, %s123
      %s138 = sphi 0, %s124
      %s142 = sphi 0, %s142
      %s144 = sphi 0, %s142
      %s145 = sphi 0, %s144
      %s159 = sphi 0, %s145
      %s163 = sphi 0, %s163
      %s165 = sphi 0, %s163
      %s166 = sphi 0, %s165
      %s180 = sphi 0, %s166
      %s184 = sphi 0, %s184
      %s186 = sphi 0, %s184
      %s187 = sphi 0, %s186
      %s201 = sphi 0, %s187
      %s205 = sphi 0, %s205
      %s207 = sphi 0, %s205
      %s208 = sphi 0, %s207
      %s222 = sphi 0, %s208
      %s228 = sphi 0, %s230
      %s231 = sphi 0, %s228
      %s232 = sphi 0, %s231
      %s248 = sphi 0, %s232
      %s254 = sphi 0, %s256
      %s257 = sphi 0, %s254
      %s258 = sphi 0, %s257
      %s274 = sphi 0, %s258
      %s280 = sphi 0, %s282
      %s283 = sphi 0, %s280
      %s284 = sphi 0, %s283
      %s300 = sphi 0, %s284
    $region4: #{forward.1} parent=1 // loop_header_branch
      %27 = sbr.rel (%p25) target = $region8
    $region5: #{forward.1} parent=1 // loop_body
      %s29 = ssub.s32 %s24, 1
      %s30 = ssub.s32 %s24, 2
      %s31 = sadd.s32 %s24, 1
      %s32 = ssub.s32 %s24, %s31
      %p33 = scmp.eq.s32.totalorder %s32, 0
      %s35 = sadd.s32 %s34, 1
      %s36 = scalar_select %p33, %s34, %s35
      %p39 = pneg %p33
      %p40 = scmp.eq.s32.totalorder %s24, 1
      %p41 = por %p39, %p40
      %p42 = scmp.ne.s32.totalorder %s34, %s37
      %p43 = scmp.eq.s32.totalorder %s24, 0
      %p44 = por %p42, %p43
      %p45 = scmp.ne.s32.totalorder %s34, %s37
      %p46 = scmp.eq.s32.totalorder %s29, 1
      %p47 = por %p45, %p46
      %p48 = scmp.ne.s32.totalorder %s37, %s38
      %p49 = scmp.eq.s32.totalorder %s29, 0
      %p50 = por %p48, %p49
      %p51 = scmp.ne.s32.totalorder %s37, %s38
      %p52 = scmp.eq.s32.totalorder %s30, 1
      %p53 = por %p51, %p52
      %p55 = scmp.ne.s32.totalorder %s38, %s54
      %p56 = scmp.eq.s32.totalorder %s30, 0
      %p57 = por %p55, %p56
      %s59 = sadd.s32 %s58, 1
      %p62 = scmp.eq.s32.totalorder %s24, 1
      %p63 = scmp.ne.s32.totalorder %s58, %s60
      %p64 = scmp.eq.s32.totalorder %s24, 0
      %p65 = por %p63, %p64
      %p66 = scmp.ne.s32.totalorder %s58, %s60
      %p67 = scmp.eq.s32.totalorder %s29, 1
      %p68 = por %p66, %p67
      %p69 = scmp.ne.s32.totalorder %s60, %s61
      %p70 = scmp.eq.s32.totalorder %s29, 0
      %p71 = por %p69, %p70
      %p72 = scmp.ne.s32.totalorder %s60, %s61
      %p73 = scmp.eq.s32.totalorder %s30, 1
      %p74 = por %p72, %p73
      %p76 = scmp.ne.s32.totalorder %s61, %s75
      %p77 = scmp.eq.s32.totalorder %s30, 0
      %p78 = por %p76, %p77
      %s80 = sadd.s32 %s79, 1
      %p83 = scmp.eq.s32.totalorder %s24, 1
      %p84 = scmp.ne.s32.totalorder %s79, %s81
      %p85 = scmp.eq.s32.totalorder %s24, 0
      %p86 = por %p84, %p85
      %p87 = scmp.ne.s32.totalorder %s79, %s81
      %p88 = scmp.eq.s32.totalorder %s29, 1
      %p89 = por %p87, %p88
      %p90 = scmp.ne.s32.totalorder %s81, %s82
      %p91 = scmp.eq.s32.totalorder %s29, 0
      %p92 = por %p90, %p91
      %p93 = scmp.ne.s32.totalorder %s81, %s82
      %p94 = scmp.eq.s32.totalorder %s30, 1
      %p95 = por %p93, %p94
      %p97 = scmp.ne.s32.totalorder %s82, %s96
      %p98 = scmp.eq.s32.totalorder %s30, 0
      %p99 = por %p97, %p98
      %s101 = sadd.s32 %s100, 1
      %p104 = scmp.eq.s32.totalorder %s24, 1
      %p105 = scmp.ne.s32.totalorder %s100, %s102
      %p106 = scmp.eq.s32.totalorder %s24, 0
      %p107 = por %p105, %p106
      %p108 = scmp.ne.s32.totalorder %s100, %s102
      %p109 = scmp.eq.s32.totalorder %s29, 1
      %p110 = por %p108, %p109
      %p111 = scmp.ne.s32.totalorder %s102, %s103
      %p112 = scmp.eq.s32.totalorder %s29, 0
      %p113 = por %p111, %p112
      %p114 = scmp.ne.s32.totalorder %s102, %s103
      %p115 = scmp.eq.s32.totalorder %s30, 1
      %p116 = por %p114, %p115
      %p118 = scmp.ne.s32.totalorder %s103, %s117
      %p119 = scmp.eq.s32.totalorder %s30, 0
      %p120 = por %p118, %p119
      %s122 = sadd.s32 %s121, 1
      %p125 = scmp.eq.s32.totalorder %s24, 1
      %p126 = scmp.ne.s32.totalorder %s121, %s123
      %p127 = scmp.eq.s32.totalorder %s24, 0
      %p128 = por %p126, %p127
      %p129 = scmp.ne.s32.totalorder %s121, %s123
      %p130 = scmp.eq.s32.totalorder %s29, 1
      %p131 = por %p129, %p130
      %p132 = scmp.ne.s32.totalorder %s123, %s124
      %p133 = scmp.eq.s32.totalorder %s29, 0
      %p134 = por %p132, %p133
      %p135 = scmp.ne.s32.totalorder %s123, %s124
      %p136 = scmp.eq.s32.totalorder %s30, 1
      %p137 = por %p135, %p136
      %p139 = scmp.ne.s32.totalorder %s124, %s138
      %p140 = scmp.eq.s32.totalorder %s30, 0
      %p141 = por %p139, %p140
      %s143 = sadd.s32 %s142, 1
      %p146 = scmp.eq.s32.totalorder %s24, 1
      %p147 = scmp.ne.s32.totalorder %s142, %s144
      %p148 = scmp.eq.s32.totalorder %s24, 0
      %p149 = por %p147, %p148
      %p150 = scmp.ne.s32.totalorder %s142, %s144
      %p151 = scmp.eq.s32.totalorder %s29, 1
      %p152 = por %p150, %p151
      %p153 = scmp.ne.s32.totalorder %s144, %s145
      %p154 = scmp.eq.s32.totalorder %s29, 0
      %p155 = por %p153, %p154
      %p156 = scmp.ne.s32.totalorder %s144, %s145
      %p157 = scmp.eq.s32.totalorder %s30, 1
      %p158 = por %p156, %p157
      %p160 = scmp.ne.s32.totalorder %s145, %s159
      %p161 = scmp.eq.s32.totalorder %s30, 0
      %p162 = por %p160, %p161
      %s164 = sadd.s32 %s163, 1
      %p167 = scmp.eq.s32.totalorder %s24, 1
      %p168 = scmp.ne.s32.totalorder %s163, %s165
      %p169 = scmp.eq.s32.totalorder %s24, 0
      %p170 = por %p168, %p169
      %p171 = scmp.ne.s32.totalorder %s163, %s165
      %p172 = scmp.eq.s32.totalorder %s29, 1
      %p173 = por %p171, %p172
      %p174 = scmp.ne.s32.totalorder %s165, %s166
      %p175 = scmp.eq.s32.totalorder %s29, 0
      %p176 = por %p174, %p175
      %p177 = scmp.ne.s32.totalorder %s165, %s166
      %p178 = scmp.eq.s32.totalorder %s30, 1
      %p179 = por %p177, %p178
      %p181 = scmp.ne.s32.totalorder %s166, %s180
      %p182 = scmp.eq.s32.totalorder %s30, 0
      %p183 = por %p181, %p182
      %s185 = sadd.s32 %s184, 1
      %p188 = scmp.eq.s32.totalorder %s24, 1
      %p189 = scmp.ne.s32.totalorder %s184, %s186
      %p190 = scmp.eq.s32.totalorder %s24, 0
      %p191 = por %p189, %p190
      %p192 = scmp.ne.s32.totalorder %s184, %s186
      %p193 = scmp.eq.s32.totalorder %s29, 1
      %p194 = por %p192, %p193
      %p195 = scmp.ne.s32.totalorder %s186, %s187
      %p196 = scmp.eq.s32.totalorder %s29, 0
      %p197 = por %p195, %p196
      %p198 = scmp.ne.s32.totalorder %s186, %s187
      %p199 = scmp.eq.s32.totalorder %s30, 1
      %p200 = por %p198, %p199
      %p202 = scmp.ne.s32.totalorder %s187, %s201
      %p203 = scmp.eq.s32.totalorder %s30, 0
      %p204 = por %p202, %p203
      %s206 = sadd.s32 %s205, 1
      %p209 = scmp.eq.s32.totalorder %s24, 1
      %p210 = scmp.ne.s32.totalorder %s205, %s207
      %p211 = scmp.eq.s32.totalorder %s24, 0
      %p212 = por %p210, %p211
      %p213 = scmp.ne.s32.totalorder %s205, %s207
      %p214 = scmp.eq.s32.totalorder %s29, 1
      %p215 = por %p213, %p214
      %p216 = scmp.ne.s32.totalorder %s207, %s208
      %p217 = scmp.eq.s32.totalorder %s29, 0
      %p218 = por %p216, %p217
      %p219 = scmp.ne.s32.totalorder %s207, %s208
      %p220 = scmp.eq.s32.totalorder %s30, 1
      %p221 = por %p219, %p220
      %p223 = scmp.ne.s32.totalorder %s208, %s222
      %p224 = scmp.eq.s32.totalorder %s30, 0
      %p225 = por %p223, %p224
      %s226 = ssub.s32 %s24, %s31
      %p227 = scmp.eq.s32.totalorder %s226, 0
      %s229 = sadd.s32 %s228, 1
      %s230 = scalar_select %p227, %s228, %s229
      %p233 = pneg %p227
      %p234 = scmp.eq.s32.totalorder %s24, 1
      %p235 = por %p233, %p234
      %p236 = scmp.ne.s32.totalorder %s228, %s231
      %p237 = scmp.eq.s32.totalorder %s24, 0
      %p238 = por %p236, %p237
      %p239 = scmp.ne.s32.totalorder %s228, %s231
      %p240 = scmp.eq.s32.totalorder %s29, 1
      %p241 = por %p239, %p240
      %p242 = scmp.ne.s32.totalorder %s231, %s232
      %p243 = scmp.eq.s32.totalorder %s29, 0
      %p244 = por %p242, %p243
      %p245 = scmp.ne.s32.totalorder %s231, %s232
      %p246 = scmp.eq.s32.totalorder %s30, 1
      %p247 = por %p245, %p246
      %p249 = scmp.ne.s32.totalorder %s232, %s248
      %p250 = scmp.eq.s32.totalorder %s30, 0
      %p251 = por %p249, %p250
      %s252 = ssub.s32 %s24, %s31
      %p253 = scmp.eq.s32.totalorder %s252, 0
      %s255 = sadd.s32 %s254, 1
      %s256 = scalar_select %p253, %s254, %s255
      %p259 = pneg %p253
      %p260 = scmp.eq.s32.totalorder %s24, 1
      %p261 = por %p259, %p260
      %p262 = scmp.ne.s32.totalorder %s254, %s257
      %p263 = scmp.eq.s32.totalorder %s24, 0
      %p264 = por %p262, %p263
      %p265 = scmp.ne.s32.totalorder %s254, %s257
      %p266 = scmp.eq.s32.totalorder %s29, 1
      %p267 = por %p265, %p266
      %p268 = scmp.ne.s32.totalorder %s257, %s258
      %p269 = scmp.eq.s32.totalorder %s29, 0
      %p270 = por %p268, %p269
      %p271 = scmp.ne.s32.totalorder %s257, %s258
      %p272 = scmp.eq.s32.totalorder %s30, 1
      %p273 = por %p271, %p272
      %p275 = scmp.ne.s32.totalorder %s258, %s274
      %p276 = scmp.eq.s32.totalorder %s30, 0
      %p277 = por %p275, %p276
      %s278 = ssub.s32 %s24, %s31
      %p279 = scmp.eq.s32.totalorder %s278, 0
      %s281 = sadd.s32 %s280, 1
      %s282 = scalar_select %p279, %s280, %s281
      %p285 = pneg %p279
      %p286 = scmp.eq.s32.totalorder %s24, 1
      %p287 = por %p285, %p286
      %p288 = scmp.ne.s32.totalorder %s280, %s283
      %p289 = scmp.eq.s32.totalorder %s24, 0
      %p290 = por %p288, %p289
      %p291 = scmp.ne.s32.totalorder %s280, %s283
      %p292 = scmp.eq.s32.totalorder %s29, 1
      %p293 = por %p291, %p292
      %p294 = scmp.ne.s32.totalorder %s283, %s284
      %p295 = scmp.eq.s32.totalorder %s29, 0
      %p296 = por %p294, %p295
      %p297 = scmp.ne.s32.totalorder %s283, %s284
      %p298 = scmp.eq.s32.totalorder %s30, 1
      %p299 = por %p297, %p298
      %p301 = scmp.ne.s32.totalorder %s284, %s300
      %p302 = scmp.eq.s32.totalorder %s30, 0
      %p303 = por %p301, %p302
      %p304 = scmp.le.s32.totalorder 1, %s24
      %p305 = scmp.lt.s32.totalorder %s24, 3
      %p306 = pnand %p304, %p305
      %p307 = pneg %p306
      // Predicated region
      $region9: #{forward.1} parent=5 // pred_check
        _
      $region10: #{forward.1} parent=5 // pred_check_branch
        %309 = sbr.rel (%p306) target = $region12
      $region11: #{forward.1} parent=5 // pred_region
        %s310 = ssub.s32 %s24, 1
        // Predicated region
        $region13: #{forward.1} parent=11 // pred_check
          %p311 = pneg %p71
        $region14: #{forward.1} parent=11 // pred_check_branch
          %313 = sbr.rel (%p311) target = $region16
        $region15: #{forward.1} parent=11 // pred_region
          %s315 = ssub.s32 2048, 2048
          %316 = vsyncadd [#allocation3], %s315
          %s317 = sshll.u32 [#allocation2], 4
          %s318 = int_to_ptr.vmem [resolvable:$true] %s317
          %323 = dma.hbm_to_vmem [thread:$0]  %s1, 2048, %s318, [#allocation3], 128, 128, 8
        $region16: #{forward.1} parent=11 // pred_fallthru
          _
        // Predicated region
        $region17: #{forward.1} parent=11 // pred_check
          %p324 = pneg %p92
        $region18: #{forward.1} parent=11 // pred_check_branch
          %326 = sbr.rel (%p324) target = $region20
        $region19: #{forward.1} parent=11 // pred_region
          _
        $region20: #{forward.1} parent=11 // pred_fallthru
          _
        // Predicated region
        $region21: #{forward.1} parent=11 // pred_check
          %p327 = pneg %p113
        $region22: #{forward.1} parent=11 // pred_check_branch
          %329 = sbr.rel (%p327) target = $region24
        $region23: #{forward.1} parent=11 // pred_region
          _
        $region24: #{forward.1} parent=11 // pred_fallthru
          _
        // Predicated region
        $region25: #{forward.1} parent=11 // pred_check
          %p330 = pneg %p134
        $region26: #{forward.1} parent=11 // pred_check_branch
          %332 = sbr.rel (%p330) target = $region28
        $region27: #{forward.1} parent=11 // pred_region
          %s334 = ssub.s32 512, 512
          %335 = vsyncadd [#allocation6], %s334
          %s336 = sshll.u32 [#allocation5], 4
          %s337 = int_to_ptr.vmem [resolvable:$true] %s336
          %342 = dma.hbm_to_vmem [thread:$0]  %s4, 512, %s337, [#allocation6], 128, 128, 8
        $region28: #{forward.1} parent=11 // pred_fallthru
          _
        // Predicated region
        $region29: #{forward.1} parent=11 // pred_check
          %p343 = pneg %p155
        $region30: #{forward.1} parent=11 // pred_check_branch
          %345 = sbr.rel (%p343) target = $region32
        $region31: #{forward.1} parent=11 // pred_region
          _
        $region32: #{forward.1} parent=11 // pred_fallthru
          _
        // Predicated region
        $region33: #{forward.1} parent=11 // pred_check
          %p346 = pneg %p176
        $region34: #{forward.1} parent=11 // pred_check_branch
          %348 = sbr.rel (%p346) target = $region36
        $region35: #{forward.1} parent=11 // pred_region
          %s350 = ssub.s32 512, 512
          %351 = vsyncadd [#allocation6], %s350
          %s352 = sshll.u32 [#allocation7], 4
          %s353 = int_to_ptr.vmem [resolvable:$true] %s352
          %358 = dma.hbm_to_vmem [thread:$0]  %s6, 512, %s353, [#allocation6], 128, 128, 8
        $region36: #{forward.1} parent=11 // pred_fallthru
          _
        // Predicated region
        $region37: #{forward.1} parent=11 // pred_check
          %p359 = pneg %p197
        $region38: #{forward.1} parent=11 // pred_check_branch
          %361 = sbr.rel (%p359) target = $region40
        $region39: #{forward.1} parent=11 // pred_region
          %s363 = ssub.s32 512, 512
          %364 = vsyncadd [#allocation9], %s363
          %s365 = sshll.u32 [#allocation8], 4
          %s366 = int_to_ptr.vmem [resolvable:$true] %s365
          %371 = dma.hbm_to_vmem [thread:$0]  %s7, 512, %s366, [#allocation9], 128, 128, 8
        $region40: #{forward.1} parent=11 // pred_fallthru
          _
        // Predicated region
        $region41: #{forward.1} parent=11 // pred_check
          %p372 = pneg %p218
        $region42: #{forward.1} parent=11 // pred_check_branch
          %374 = sbr.rel (%p372) target = $region44
        $region43: #{forward.1} parent=11 // pred_region
          _
        $region44: #{forward.1} parent=11 // pred_fallthru
          _
      $region12: #{forward.1} parent=5 // pred_fallthru
        _
      %p375 = scmp.lt.s32.totalorder %s24, 2
      // Predicated region
      $region45: #{forward.1} parent=5 // pred_check
        %p376 = pneg %p375
      $region46: #{forward.1} parent=5 // pred_check_branch
        %378 = sbr.rel (%p376) target = $region48
      $region47: #{forward.1} parent=5 // pred_region
        // Predicated region
        $region49: #{forward.1} parent=47 // pred_check
          %p379 = pneg %p44
        $region50: #{forward.1} parent=47 // pred_check_branch
          %381 = sbr.rel (%p379) target = $region52
        $region51: #{forward.1} parent=47 // pred_region
          %p382 = scmp.lt.s32.totalorder %s24, 1
          %s383 = scalar_select %p382, %s24, 1
          %s384 = smul.addr %s383, 8
          %s385 = scalar_lea.vmem %s0, %s384
        $region52: #{forward.1} parent=47 // pred_fallthru
          _
      $region48: #{forward.1} parent=5 // pred_fallthru
        _
      %p386 = scmp.le.s32.totalorder 1, %s24
      %p387 = scmp.lt.s32.totalorder %s24, 3
      %p388 = pnand %p386, %p387
      %p389 = pneg %p388
      // Predicated region
      $region53: #{forward.1} parent=5 // pred_check
        _
      $region54: #{forward.1} parent=5 // pred_check_branch
        %391 = sbr.rel (%p388) target = $region56
      $region55: #{forward.1} parent=5 // pred_region
        %s392 = ssub.s32 %s24, 1
        // Predicated region
        $region57: #{forward.1} parent=55 // pred_check
          %p393 = pneg %p71
        $region58: #{forward.1} parent=55 // pred_check_branch
          %395 = sbr.rel (%p393) target = $region60
        $region59: #{forward.1} parent=55 // pred_region
          %396 = dma.done [#allocation3], 2048
        $region60: #{forward.1} parent=55 // pred_fallthru
          _
        // Predicated region
        $region61: #{forward.1} parent=55 // pred_check
          %p397 = pneg %p134
        $region62: #{forward.1} parent=55 // pred_check_branch
          %399 = sbr.rel (%p397) target = $region64
        $region63: #{forward.1} parent=55 // pred_region
          %400 = dma.done [#allocation6], 512
        $region64: #{forward.1} parent=55 // pred_fallthru
          _
        // Predicated region
        $region65: #{forward.1} parent=55 // pred_check
          %p401 = pneg %p176
        $region66: #{forward.1} parent=55 // pred_check_branch
          %403 = sbr.rel (%p401) target = $region68
        $region67: #{forward.1} parent=55 // pred_region
          %404 = dma.done [#allocation6], 512
        $region68: #{forward.1} parent=55 // pred_fallthru
          _
        // Predicated region
        $region69: #{forward.1} parent=55 // pred_check
          %p405 = pneg %p197
        $region70: #{forward.1} parent=55 // pred_check_branch
          %407 = sbr.rel (%p405) target = $region72
        $region71: #{forward.1} parent=55 // pred_region
          %408 = dma.done [#allocation9], 512
        $region72: #{forward.1} parent=55 // pred_fallthru
          _
        %p409 = scmp.lt.s32.totalorder %s29, 1
        %s410 = scalar_select %p409, %s29, 1
        %s411 = smul.addr %s410, 8
        %s412 = scalar_lea.vmem %s0, %s411
        %p413 = pneg %p50
        %p414 = pneg %p47
        %p415 = pneg %p71
        %p416 = pneg %p68
        %p417 = pneg %p92
        %p418 = pneg %p89
        %p419 = pneg %p113
        %p420 = pneg %p110
        %p421 = pneg %p134
        %p422 = pneg %p131
        %p423 = pneg %p155
        %p424 = pneg %p152
        %p425 = pneg %p176
        %p426 = pneg %p173
        %p427 = pneg %p197
        %p428 = pneg %p194
        %p429 = pneg %p218
        %p430 = pneg %p215
        %p431 = pneg %p244
        %p432 = pneg %p241
        %s433 = sand.u32 %s231, 1
        %s434 = scalar_lea.sflag [#allocation4], %s433
        %s435 = sand.u32 %s231, 1
        %s436 = smul.addr %s435, 8
        %s437 = scalar_lea.vmem [#allocation10], %s436
        %p438 = pneg %p270
        %p439 = pneg %p267
        %p440 = scmp.lt.s32.totalorder %s29, 1
        %s441 = scalar_select %p440, %s29, 1
        %s442 = smul.addr %s441, 2
        %s443 = scalar_lea.vmem %s10, %s442
        %p444 = pneg %p296
        %p445 = pneg %p293
        %p446 = scmp.lt.s32.totalorder %s29, 1
        %s447 = scalar_select %p446, %s29, 1
        %s448 = smul.addr %s447, 2
        %s449 = scalar_lea.vmem %s11, %s448
        %p450 = scmp.lt.s32.totalorder %s29, 1
        %s451 = scalar_select %p450, %s29, 1
        %s452 = smul.addr %s451, 8
        %s453 = scalar_lea.vmem %s0, %s452
        %p454 = scmp.lt.s32.totalorder %s29, 1
        %s455 = scalar_select %p454, %s29, 1
        %s456 = smul.addr %s455, 2
        %s457 = scalar_lea.vmem %s10, %s456
        %p458 = scmp.lt.s32.totalorder %s29, 1
        %s459 = scalar_select %p458, %s29, 1
        %s460 = smul.addr %s459, 2
        %s461 = scalar_lea.vmem %s11, %s460
        %v462 = vld [vmem:[%s453] sm:$0xff]
        %v463 = vlaneseq
        %v464 = vand.u32 %v463, 127
        %465 = vset.pattern.permute.xlu0 0
        %466 = vperm.xlu0 %465, %v462
        %v467 = vpop.permute.xlu0 %466
        %vm468 = vcmp.eq.s32.totalorder %v464, %v467
        %v469 = vsel %vm468, 1, 0
        %v470 = vcvt.s32.f32 %v469
        %v471 = vld [vmem:[#allocation2] sm:$0xff]
        %v472 = vld [vmem:[#allocation2 + $0x8] sm:$0xff]
        %v473 = vld [vmem:[#allocation2 + $0x10] sm:$0xff]
        %v474 = vld [vmem:[#allocation2 + $0x18] sm:$0xff]
        %v475 = vld [vmem:[#allocation2 + $0x20] sm:$0xff]
        %v476 = vld [vmem:[#allocation2 + $0x28] sm:$0xff]
        %v477 = vld [vmem:[#allocation2 + $0x30] sm:$0xff]
        %v478 = vld [vmem:[#allocation2 + $0x38] sm:$0xff]
        %v479 = vld [vmem:[#allocation2 + $0x40] sm:$0xff]
        %v480 = vld [vmem:[#allocation2 + $0x48] sm:$0xff]
        %v481 = vld [vmem:[#allocation2 + $0x50] sm:$0xff]
        %v482 = vld [vmem:[#allocation2 + $0x58] sm:$0xff]
        %v483 = vld [vmem:[#allocation2 + $0x60] sm:$0xff]
        %v484 = vld [vmem:[#allocation2 + $0x68] sm:$0xff]
        %v485 = vld [vmem:[#allocation2 + $0x70] sm:$0xff]
        %v486 = vld [vmem:[#allocation2 + $0x78] sm:$0xff]
        %v487 = vld [vmem:[%s2] sm:$0x1]
        %v489 = vlaneseq
        %v490 = vshrl.u32 %v489, 7
        %v491 = vsub.s32 0, %v490
        %v492 = vrot.slane %v487, %v491
        %494 = vmatprep.subr.mxu0 0.0
        %495 = vmatpush1.msra.mxu0 %v471
        %496 = vmatprep.subr.mxu0 0.0
        %497 = vmatpush1.msra.mxu0 %v472
        %498 = vmatprep.subr.mxu0 0.0
        %499 = vmatpush1.msra.mxu0 %v473
        %500 = vmatprep.subr.mxu0 0.0
        %501 = vmatpush1.msra.mxu0 %v474
        %502 = vmatprep.subr.mxu0 0.0
        %503 = vmatpush1.msra.mxu0 %v475
        %504 = vmatprep.subr.mxu0 0.0
        %505 = vmatpush1.msra.mxu0 %v476
        %506 = vmatprep.subr.mxu0 0.0
        %507 = vmatpush1.msra.mxu0 %v477
        %508 = vmatprep.subr.mxu0 0.0
        %509 = vmatpush1.msra.mxu0 %v478
        %510 = vmatprep.subr.mxu0 0.0
        %511 = vmatpush1.msra.mxu0 %v479
        %512 = vmatprep.subr.mxu0 0.0
        %513 = vmatpush1.msra.mxu0 %v480
        %514 = vmatprep.subr.mxu0 0.0
        %515 = vmatpush1.msra.mxu0 %v481
        %516 = vmatprep.subr.mxu0 0.0
        %517 = vmatpush1.msra.mxu0 %v482
        %518 = vmatprep.subr.mxu0 0.0
        %519 = vmatpush1.msra.mxu0 %v483
        %520 = vmatprep.subr.mxu0 0.0
        %521 = vmatpush1.msra.mxu0 %v484
        %522 = vmatprep.subr.mxu0 0.0
        %523 = vmatpush1.msra.mxu0 %v485
        %524 = vmatprep.subr.mxu0 0.0
        %525 = vmatpush1.msra.mxu0 %v486
        %526 = vmatprep.subr.mxu0 0.0
        %527 = vmatpush1.msra.mxu0 0.0
        %528 = vmatprep.subr.mxu0 0.0
        %529 = vmatpush1.msra.mxu0 0.0
        %530 = vmatprep.subr.mxu0 0.0
        %531 = vmatpush1.msra.mxu0 0.0
        %532 = vmatprep.subr.mxu0 0.0
        %533 = vmatpush1.msra.mxu0 0.0
        %534 = vmatprep.subr.mxu0 0.0
        %535 = vmatpush1.msra.mxu0 0.0
        %536 = vmatprep.subr.mxu0 0.0
        %537 = vmatpush1.msra.mxu0 0.0
        %538 = vmatprep.subr.mxu0 0.0
        %539 = vmatpush1.msra.mxu0 0.0
        %540 = vmatprep.subr.mxu0 0.0
        %541 = vmatpush1.msra.mxu0 0.0
        %542 = vmatprep.subr.mxu0 0.0
        %543 = vmatpush1.msra.mxu0 0.0
        %544 = vmatprep.subr.mxu0 0.0
        %545 = vmatpush1.msra.mxu0 0.0
        %546 = vmatprep.subr.mxu0 0.0
        %547 = vmatpush1.msra.mxu0 0.0
        %548 = vmatprep.subr.mxu0 0.0
        %549 = vmatpush1.msra.mxu0 0.0
        %550 = vmatprep.subr.mxu0 0.0
        %551 = vmatpush1.msra.mxu0 0.0
        %552 = vmatprep.subr.mxu0 0.0
        %553 = vmatpush1.msra.mxu0 0.0
        %554 = vmatprep.subr.mxu0 0.0
        %555 = vmatpush1.msra.mxu0 0.0
        %556 = vmatprep.subr.mxu0 0.0
        %557 = vmatpush1.msra.mxu0 0.0
        %558 = vmatprep.mubr.f32.mxu0 0.0
        %559 = vmatmul.mubr.f32.gmra.mrb[0].mxu0 %v470
        %v560 = vpop.f32.mrb[0].mxu0
        %v561 = vadd.f32 %v492, %v560
        %v562 = vpop.f32.mrb[0].mxu0
        %563 = vdwg.mxu0
        %vm564 = vcmp.ge.s32.totalorder %v464, 64
        %vm565 = vcmp.lt.s32.totalorder %v464, 96
        %vm566 = vmand %vm564, %vm565
        %v567 = vsel %vm566, 1.0, 0.5
        %v568 = vsel %vm566, 0.0, 0.5
        %v569 = vld [vmem:[%s3] sm:$0xff]
        %v570 = vld [vmem:[%s3 + $0x8] sm:$0xff]
        %v571 = vld [vmem:[%s3 + $0x10] sm:$0xff]
        %v572 = vld [vmem:[%s3 + $0x18] sm:$0xff]
        %vm573 = vcmask 261120
        %v575 = vsel %vm573, 0.0, 0
        %577 = vmatprep.subr.mxu0 0.0
        %578 = vmatpush1.msra.mxu0 %v569
        %579 = vmatprep.subr.mxu0 0.0
        %580 = vmatpush1.msra.mxu0 %v570
        %581 = vmatprep.subr.mxu0 0.0
        %582 = vmatpush1.msra.mxu0 %v571
        %583 = vmatprep.subr.mxu0 0.0
        %584 = vmatpush1.msra.mxu0 %v572
        %585 = vmatprep.subr.mxu0 0.0
        %586 = vmatpush1.msra.mxu0 0.0
        %587 = vmatprep.subr.mxu0 0.0
        %588 = vmatpush1.msra.mxu0 0.0
        %589 = vmatprep.subr.mxu0 0.0
        %590 = vmatpush1.msra.mxu0 0.0
        %591 = vmatprep.subr.mxu0 0.0
        %592 = vmatpush1.msra.mxu0 0.0
        %593 = vmatprep.subr.mxu0 0.0
        %594 = vmatpush1.msra.mxu0 0.0
        %595 = vmatprep.subr.mxu0 0.0
        %596 = vmatpush1.msra.mxu0 0.0
        %597 = vmatprep.subr.mxu0 0.0
        %598 = vmatpush1.msra.mxu0 0.0
        %599 = vmatprep.subr.mxu0 0.0
        %600 = vmatpush1.msra.mxu0 0.0
        %601 = vmatprep.subr.mxu0 0.0
        %602 = vmatpush1.msra.mxu0 0.0
        %603 = vmatprep.subr.mxu0 0.0
        %604 = vmatpush1.msra.mxu0 0.0
        %605 = vmatprep.subr.mxu0 0.0
        %606 = vmatpush1.msra.mxu0 0.0
        %607 = vmatprep.subr.mxu0 0.0
        %608 = vmatpush1.msra.mxu0 0.0
        %609 = vmatprep.subr.mxu0 0.0
        %610 = vmatpush1.msra.mxu0 0.0
        %611 = vmatprep.subr.mxu0 0.0
        %612 = vmatpush1.msra.mxu0 0.0
        %613 = vmatprep.subr.mxu0 0.0
        %614 = vmatpush1.msra.mxu0 0.0
        %615 = vmatprep.subr.mxu0 0.0
        %616 = vmatpush1.msra.mxu0 0.0
        %617 = vmatprep.subr.mxu0 0.0
        %618 = vmatpush1.msra.mxu0 0.0
        %619 = vmatprep.subr.mxu0 0.0
        %620 = vmatpush1.msra.mxu0 0.0
        %621 = vmatprep.subr.mxu0 0.0
        %622 = vmatpush1.msra.mxu0 0.0
        %623 = vmatprep.subr.mxu0 0.0
        %624 = vmatpush1.msra.mxu0 0.0
        %625 = vmatprep.subr.mxu0 0.0
        %626 = vmatpush1.msra.mxu0 0.0
        %627 = vmatprep.subr.mxu0 0.0
        %628 = vmatpush1.msra.mxu0 0.0
        %629 = vmatprep.subr.mxu0 0.0
        %630 = vmatpush1.msra.mxu0 0.0
        %631 = vmatprep.subr.mxu0 0.0
        %632 = vmatpush1.msra.mxu0 0.0
        %633 = vmatprep.subr.mxu0 0.0
        %634 = vmatpush1.msra.mxu0 0.0
        %635 = vmatprep.subr.mxu0 0.0
        %636 = vmatpush1.msra.mxu0 0.0
        %637 = vmatprep.subr.mxu0 0.0
        %638 = vmatpush1.msra.mxu0 0.0
        %639 = vmatprep.subr.mxu0 0.0
        %640 = vmatpush1.msra.mxu0 0.0
        %641 = vmatprep.mubr.f32.mxu0 0.0
        %642 = vmatmul.mubr.f32.gmra.mrb[0].mxu0 %v575
        %v643 = vpop.f32.mrb[0].mxu0
        %v644 = vadd.f32 0.0, %v643
        %v645 = vpop.f32.mrb[0].mxu0
        %646 = vdwg.mxu0
        %v647 = vadd.f32 %v561, %v644
        %v648 = vmul.f32 %v647, %v567
        %v649 = vtanh.pop %v648
        %v650 = vmul.f32 %v649, %v567
        %v651 = vadd.f32 %v650, %v568
        %v652 = vmul.f32 %v651, 0.0
        %654 = vrot.lane.b32.xlu0 %v651, 64
        %v655 = vpop.permute.xlu0 %654
        %v657 = vmul.f32 %v651, %v655
        %659 = vrot.lane.b32.xlu0 %v657, 32
        %v660 = vpop.permute.xlu0 %659
        %v662 = vadd.f32 %v652, %v660
        %v663 = vtanh.pop %v662
        %665 = vrot.lane.b32.xlu0 %v663, 64
        %v666 = vpop.permute.xlu0 %665
        %v668 = vmul.f32 %v651, %v666
        %670 = vrot.lane.b32.xlu0 %v668, 32
        %v671 = vpop.permute.xlu0 %670
        %v672 = vsel %vm573, %v671, 0
        %674 = vmatprep.subr.mxu0 0.0
        %675 = vmatpush1.msra.mxu0 %v569
        %676 = vmatprep.subr.mxu0 0.0
        %677 = vmatpush1.msra.mxu0 %v570
        %678 = vmatprep.subr.mxu0 0.0
        %679 = vmatpush1.msra.mxu0 %v571
        %680 = vmatprep.subr.mxu0 0.0
        %681 = vmatpush1.msra.mxu0 %v572
        %682 = vmatprep.subr.mxu0 0.0
        %683 = vmatpush1.msra.mxu0 0.0
        %684 = vmatprep.subr.mxu0 0.0
        %685 = vmatpush1.msra.mxu0 0.0
        %686 = vmatprep.subr.mxu0 0.0
        %687 = vmatpush1.msra.mxu0 0.0
        %688 = vmatprep.subr.mxu0 0.0
        %689 = vmatpush1.msra.mxu0 0.0
        %690 = vmatprep.subr.mxu0 0.0
        %691 = vmatpush1.msra.mxu0 0.0
        %692 = vmatprep.subr.mxu0 0.0
        %693 = vmatpush1.msra.mxu0 0.0
        %694 = vmatprep.subr.mxu0 0.0
        %695 = vmatpush1.msra.mxu0 0.0
        %696 = vmatprep.subr.mxu0 0.0
        %697 = vmatpush1.msra.mxu0 0.0
        %698 = vmatprep.subr.mxu0 0.0
        %699 = vmatpush1.msra.mxu0 0.0
        %700 = vmatprep.subr.mxu0 0.0
        %701 = vmatpush1.msra.mxu0 0.0
        %702 = vmatprep.subr.mxu0 0.0
        %703 = vmatpush1.msra.mxu0 0.0
        %704 = vmatprep.subr.mxu0 0.0
        %705 = vmatpush1.msra.mxu0 0.0
        %706 = vmatprep.subr.mxu0 0.0
        %707 = vmatpush1.msra.mxu0 0.0
        %708 = vmatprep.subr.mxu0 0.0
        %709 = vmatpush1.msra.mxu0 0.0
        %710 = vmatprep.subr.mxu0 0.0
        %711 = vmatpush1.msra.mxu0 0.0
        %712 = vmatprep.subr.mxu0 0.0
        %713 = vmatpush1.msra.mxu0 0.0
        %714 = vmatprep.subr.mxu0 0.0
        %715 = vmatpush1.msra.mxu0 0.0
        %716 = vmatprep.subr.mxu0 0.0
        %717 = vmatpush1.msra.mxu0 0.0
        %718 = vmatprep.subr.mxu0 0.0
        %719 = vmatpush1.msra.mxu0 0.0
        %720 = vmatprep.subr.mxu0 0.0
        %721 = vmatpush1.msra.mxu0 0.0
        %722 = vmatprep.subr.mxu0 0.0
        %723 = vmatpush1.msra.mxu0 0.0
        %724 = vmatprep.subr.mxu0 0.0
        %725 = vmatpush1.msra.mxu0 0.0
        %726 = vmatprep.subr.mxu0 0.0
        %727 = vmatpush1.msra.mxu0 0.0
        %728 = vmatprep.subr.mxu0 0.0
        %729 = vmatpush1.msra.mxu0 0.0
        %730 = vmatprep.subr.mxu0 0.0
        %731 = vmatpush1.msra.mxu0 0.0
        %732 = vmatprep.subr.mxu0 0.0
        %733 = vmatpush1.msra.mxu0 0.0
        %734 = vmatprep.subr.mxu0 0.0
        %735 = vmatpush1.msra.mxu0 0.0
        %736 = vmatprep.subr.mxu0 0.0
        %737 = vmatpush1.msra.mxu0 0.0
        %738 = vmatprep.mubr.f32.mxu0 0.0
        %739 = vmatmul.mubr.f32.gmra.mrb[0].mxu0 %v672
        %v740 = vpop.f32.mrb[0].mxu0
        %v741 = vadd.f32 0.0, %v740
        %v742 = vpop.f32.mrb[0].mxu0
        %743 = vdwg.mxu0
        %v745 = vrot.slane %v741, 7
        %v747 = vadd.f32 %v561, %v745
        %v748 = vmul.f32 %v747, %v567
        %v749 = vtanh.pop %v748
        %v750 = vmul.f32 %v749, %v567
        %v751 = vadd.f32 %v750, %v568
        %v753 = vrot.slane %v662, 7
        %v755 = vmul.f32 %v751, %v753
        %757 = vrot.lane.b32.xlu0 %v751, 64
        %v758 = vpop.permute.xlu0 %757
        %v760 = vmul.f32 %v751, %v758
        %762 = vrot.lane.b32.xlu0 %v760, 32
        %v763 = vpop.permute.xlu0 %762
        %v765 = vadd.f32 %v755, %v763
        %v766 = vtanh.pop %v765
        %768 = vrot.lane.b32.xlu0 %v766, 64
        %v769 = vpop.permute.xlu0 %768
        %v771 = vmul.f32 %v751, %v769
        %v773 = vrot.slane %v771, 1
        %774 = vrot.lane.b32.xlu0 %v773, 32
        %v775 = vpop.permute.xlu0 %774
        %v776 = vsel %vm573, %v775, 0
        %778 = vmatprep.subr.mxu0 0.0
        %779 = vmatpush1.msra.mxu0 %v569
        %780 = vmatprep.subr.mxu0 0.0
        %781 = vmatpush1.msra.mxu0 %v570
        %782 = vmatprep.subr.mxu0 0.0
        %783 = vmatpush1.msra.mxu0 %v571
        %784 = vmatprep.subr.mxu0 0.0
        %785 = vmatpush1.msra.mxu0 %v572
        %786 = vmatprep.subr.mxu0 0.0
        %787 = vmatpush1.msra.mxu0 0.0
        %788 = vmatprep.subr.mxu0 0.0
        %789 = vmatpush1.msra.mxu0 0.0
        %790 = vmatprep.subr.mxu0 0.0
        %791 = vmatpush1.msra.mxu0 0.0
        %792 = vmatprep.subr.mxu0 0.0
        %793 = vmatpush1.msra.mxu0 0.0
        %794 = vmatprep.subr.mxu0 0.0
        %795 = vmatpush1.msra.mxu0 0.0
        %796 = vmatprep.subr.mxu0 0.0
        %797 = vmatpush1.msra.mxu0 0.0
        %798 = vmatprep.subr.mxu0 0.0
        %799 = vmatpush1.msra.mxu0 0.0
        %800 = vmatprep.subr.mxu0 0.0
        %801 = vmatpush1.msra.mxu0 0.0
        %802 = vmatprep.subr.mxu0 0.0
        %803 = vmatpush1.msra.mxu0 0.0
        %804 = vmatprep.subr.mxu0 0.0
        %805 = vmatpush1.msra.mxu0 0.0
        %806 = vmatprep.subr.mxu0 0.0
        %807 = vmatpush1.msra.mxu0 0.0
        %808 = vmatprep.subr.mxu0 0.0
        %809 = vmatpush1.msra.mxu0 0.0
        %810 = vmatprep.subr.mxu0 0.0
        %811 = vmatpush1.msra.mxu0 0.0
        %812 = vmatprep.subr.mxu0 0.0
        %813 = vmatpush1.msra.mxu0 0.0
        %814 = vmatprep.subr.mxu0 0.0
        %815 = vmatpush1.msra.mxu0 0.0
        %816 = vmatprep.subr.mxu0 0.0
        %817 = vmatpush1.msra.mxu0 0.0
        %818 = vmatprep.subr.mxu0 0.0
        %819 = vmatpush1.msra.mxu0 0.0
        %820 = vmatprep.subr.mxu0 0.0
        %821 = vmatpush1.msra.mxu0 0.0
        %822 = vmatprep.subr.mxu0 0.0
        %823 = vmatpush1.msra.mxu0 0.0
        %824 = vmatprep.subr.mxu0 0.0
        %825 = vmatpush1.msra.mxu0 0.0
        %826 = vmatprep.subr.mxu0 0.0
        %827 = vmatpush1.msra.mxu0 0.0
        %828 = vmatprep.subr.mxu0 0.0
        %829 = vmatpush1.msra.mxu0 0.0
        %830 = vmatprep.subr.mxu0 0.0
        %831 = vmatpush1.msra.mxu0 0.0
        %832 = vmatprep.subr.mxu0 0.0
        %833 = vmatpush1.msra.mxu0 0.0
        %834 = vmatprep.subr.mxu0 0.0
        %835 = vmatpush1.msra.mxu0 0.0
        %836 = vmatprep.subr.mxu0 0.0
        %837 = vmatpush1.msra.mxu0 0.0
        %838 = vmatprep.subr.mxu0 0.0
        %839 = vmatpush1.msra.mxu0 0.0
        %840 = vmatprep.subr.mxu0 0.0
        %841 = vmatpush1.msra.mxu0 0.0
        %842 = vmatprep.mubr.f32.mxu0 0.0
        %843 = vmatmul.mubr.f32.gmra.mrb[0].mxu0 %v776
        %v844 = vpop.f32.mrb[0].mxu0
        %v845 = vadd.f32 0.0, %v844
        %v846 = vpop.f32.mrb[0].mxu0
        %847 = vdwg.mxu0
        %v849 = vrot.slane %v845, 6
        %v851 = vadd.f32 %v561, %v849
        %v852 = vmul.f32 %v851, %v567
        %v853 = vtanh.pop %v852
        %v854 = vmul.f32 %v853, %v567
        %v855 = vadd.f32 %v854, %v568
        %v857 = vrot.slane %v765, 7
        %v859 = vmul.f32 %v855, %v857
        %861 = vrot.lane.b32.xlu0 %v855, 64
        %v862 = vpop.permute.xlu0 %861
        %v864 = vmul.f32 %v855, %v862
        %866 = vrot.lane.b32.xlu0 %v864, 32
        %v867 = vpop.permute.xlu0 %866
        %v869 = vadd.f32 %v859, %v867
        %v870 = vtanh.pop %v869
        %872 = vrot.lane.b32.xlu0 %v870, 64
        %v873 = vpop.permute.xlu0 %872
        %v875 = vmul.f32 %v855, %v873
        %v877 = vrot.slane %v875, 2
        %878 = vrot.lane.b32.xlu0 %v877, 32
        %v879 = vpop.permute.xlu0 %878
        %v880 = vsel %vm573, %v879, 0
        %882 = vmatprep.subr.mxu0 0.0
        %883 = vmatpush1.msra.mxu0 %v569
        %884 = vmatprep.subr.mxu0 0.0
        %885 = vmatpush1.msra.mxu0 %v570
        %886 = vmatprep.subr.mxu0 0.0
        %887 = vmatpush1.msra.mxu0 %v571
        %888 = vmatprep.subr.mxu0 0.0
        %889 = vmatpush1.msra.mxu0 %v572
        %890 = vmatprep.subr.mxu0 0.0
        %891 = vmatpush1.msra.mxu0 0.0
        %892 = vmatprep.subr.mxu0 0.0
        %893 = vmatpush1.msra.mxu0 0.0
        %894 = vmatprep.subr.mxu0 0.0
        %895 = vmatpush1.msra.mxu0 0.0
        %896 = vmatprep.subr.mxu0 0.0
        %897 = vmatpush1.msra.mxu0 0.0
        %898 = vmatprep.subr.mxu0 0.0
        %899 = vmatpush1.msra.mxu0 0.0
        %900 = vmatprep.subr.mxu0 0.0
        %901 = vmatpush1.msra.mxu0 0.0
        %902 = vmatprep.subr.mxu0 0.0
        %903 = vmatpush1.msra.mxu0 0.0
        %904 = vmatprep.subr.mxu0 0.0
        %905 = vmatpush1.msra.mxu0 0.0
        %906 = vmatprep.subr.mxu0 0.0
        %907 = vmatpush1.msra.mxu0 0.0
        %908 = vmatprep.subr.mxu0 0.0
        %909 = vmatpush1.msra.mxu0 0.0
        %910 = vmatprep.subr.mxu0 0.0
        %911 = vmatpush1.msra.mxu0 0.0
        %912 = vmatprep.subr.mxu0 0.0
        %913 = vmatpush1.msra.mxu0 0.0
        %914 = vmatprep.subr.mxu0 0.0
        %915 = vmatpush1.msra.mxu0 0.0
        %916 = vmatprep.subr.mxu0 0.0
        %917 = vmatpush1.msra.mxu0 0.0
        %918 = vmatprep.subr.mxu0 0.0
        %919 = vmatpush1.msra.mxu0 0.0
        %920 = vmatprep.subr.mxu0 0.0
        %921 = vmatpush1.msra.mxu0 0.0
        %922 = vmatprep.subr.mxu0 0.0
        %923 = vmatpush1.msra.mxu0 0.0
        %924 = vmatprep.subr.mxu0 0.0
        %925 = vmatpush1.msra.mxu0 0.0
        %926 = vmatprep.subr.mxu0 0.0
        %927 = vmatpush1.msra.mxu0 0.0
        %928 = vmatprep.subr.mxu0 0.0
        %929 = vmatpush1.msra.mxu0 0.0
        %930 = vmatprep.subr.mxu0 0.0
        %931 = vmatpush1.msra.mxu0 0.0
        %932 = vmatprep.subr.mxu0 0.0
        %933 = vmatpush1.msra.mxu0 0.0
        %934 = vmatprep.subr.mxu0 0.0
        %935 = vmatpush1.msra.mxu0 0.0
        %936 = vmatprep.subr.mxu0 0.0
        %937 = vmatpush1.msra.mxu0 0.0
        %938 = vmatprep.subr.mxu0 0.0
        %939 = vmatpush1.msra.mxu0 0.0
        %940 = vmatprep.subr.mxu0 0.0
        %941 = vmatpush1.msra.mxu0 0.0
        %942 = vmatprep.subr.mxu0 0.0
        %943 = vmatpush1.msra.mxu0 0.0
        %944 = vmatprep.subr.mxu0 0.0
        %945 = vmatpush1.msra.mxu0 0.0
        %946 = vmatprep.mubr.f32.mxu0 0.0
        %947 = vmatmul.mubr.f32.gmra.mrb[0].mxu0 %v880
        %v948 = vpop.f32.mrb[0].mxu0
        %v949 = vadd.f32 0.0, %v948
        %v950 = vpop.f32.mrb[0].mxu0
        %951 = vdwg.mxu0
        %v953 = vrot.slane %v949, 5
        %v955 = vadd.f32 %v561, %v953
        %v956 = vmul.f32 %v955, %v567
        %v957 = vtanh.pop %v956
        %v958 = vmul.f32 %v957, %v567
        %v959 = vadd.f32 %v958, %v568
        %v961 = vrot.slane %v869, 7
        %v963 = vmul.f32 %v959, %v961
        %965 = vrot.lane.b32.xlu0 %v959, 64
        %v966 = vpop.permute.xlu0 %965
        %v968 = vmul.f32 %v959, %v966
        %970 = vrot.lane.b32.xlu0 %v968, 32
        %v971 = vpop.permute.xlu0 %970
        %v973 = vadd.f32 %v963, %v971
        %v974 = vtanh.pop %v973
        %976 = vrot.lane.b32.xlu0 %v974, 64
        %v977 = vpop.permute.xlu0 %976
        %v979 = vmul.f32 %v959, %v977
        %v981 = vrot.slane %v979, 3
        %982 = vrot.lane.b32.xlu0 %v981, 32
        %v983 = vpop.permute.xlu0 %982
        %v984 = vsel %vm573, %v983, 0
        %986 = vmatprep.subr.mxu0 0.0
        %987 = vmatpush1.msra.mxu0 %v569
        %988 = vmatprep.subr.mxu0 0.0
        %989 = vmatpush1.msra.mxu0 %v570
        %990 = vmatprep.subr.mxu0 0.0
        %991 = vmatpush1.msra.mxu0 %v571
        %992 = vmatprep.subr.mxu0 0.0
        %993 = vmatpush1.msra.mxu0 %v572
        %994 = vmatprep.subr.mxu0 0.0
        %995 = vmatpush1.msra.mxu0 0.0
        %996 = vmatprep.subr.mxu0 0.0
        %997 = vmatpush1.msra.mxu0 0.0
        %998 = vmatprep.subr.mxu0 0.0
        %999 = vmatpush1.msra.mxu0 0.0
        %1000 = vmatprep.subr.mxu0 0.0
        %1001 = vmatpush1.msra.mxu0 0.0
        %1002 = vmatprep.subr.mxu0 0.0
        %1003 = vmatpush1.msra.mxu0 0.0
        %1004 = vmatprep.subr.mxu0 0.0
        %1005 = vmatpush1.msra.mxu0 0.0
        %1006 = vmatprep.subr.mxu0 0.0
        %1007 = vmatpush1.msra.mxu0 0.0
        %1008 = vmatprep.subr.mxu0 0.0
        %1009 = vmatpush1.msra.mxu0 0.0
        %1010 = vmatprep.subr.mxu0 0.0
        %1011 = vmatpush1.msra.mxu0 0.0
        %1012 = vmatprep.subr.mxu0 0.0
        %1013 = vmatpush1.msra.mxu0 0.0
        %1014 = vmatprep.subr.mxu0 0.0
        %1015 = vmatpush1.msra.mxu0 0.0
        %1016 = vmatprep.subr.mxu0 0.0
        %1017 = vmatpush1.msra.mxu0 0.0
        %1018 = vmatprep.subr.mxu0 0.0
        %1019 = vmatpush1.msra.mxu0 0.0
        %1020 = vmatprep.subr.mxu0 0.0
        %1021 = vmatpush1.msra.mxu0 0.0
        %1022 = vmatprep.subr.mxu0 0.0
        %1023 = vmatpush1.msra.mxu0 0.0
        %1024 = vmatprep.subr.mxu0 0.0
        %1025 = vmatpush1.msra.mxu0 0.0
        %1026 = vmatprep.subr.mxu0 0.0
        %1027 = vmatpush1.msra.mxu0 0.0
        %1028 = vmatprep.subr.mxu0 0.0
        %1029 = vmatpush1.msra.mxu0 0.0
        %1030 = vmatprep.subr.mxu0 0.0
        %1031 = vmatpush1.msra.mxu0 0.0
        %1032 = vmatprep.subr.mxu0 0.0
        %1033 = vmatpush1.msra.mxu0 0.0
        %1034 = vmatprep.subr.mxu0 0.0
        %1035 = vmatpush1.msra.mxu0 0.0
        %1036 = vmatprep.subr.mxu0 0.0
        %1037 = vmatpush1.msra.mxu0 0.0
        %1038 = vmatprep.subr.mxu0 0.0
        %1039 = vmatpush1.msra.mxu0 0.0
        %1040 = vmatprep.subr.mxu0 0.0
        %1041 = vmatpush1.msra.mxu0 0.0
        %1042 = vmatprep.subr.mxu0 0.0
        %1043 = vmatpush1.msra.mxu0 0.0
        %1044 = vmatprep.subr.mxu0 0.0
        %1045 = vmatpush1.msra.mxu0 0.0
        %1046 = vmatprep.subr.mxu0 0.0
        %1047 = vmatpush1.msra.mxu0 0.0
        %1048 = vmatprep.subr.mxu0 0.0
        %1049 = vmatpush1.msra.mxu0 0.0
        %1050 = vmatprep.mubr.f32.mxu0 0.0
        %1051 = vmatmul.mubr.f32.gmra.mrb[0].mxu0 %v984
        %v1052 = vpop.f32.mrb[0].mxu0
        %v1053 = vadd.f32 0.0, %v1052
        %v1054 = vpop.f32.mrb[0].mxu0
        %1055 = vdwg.mxu0
        %v1057 = vrot.slane %v1053, 4
        %v1059 = vadd.f32 %v561, %v1057
        %v1060 = vmul.f32 %v1059, %v567
        %v1061 = vtanh.pop %v1060
        %v1062 = vmul.f32 %v1061, %v567
        %v1063 = vadd.f32 %v1062, %v568
        %v1065 = vrot.slane %v973, 7
        %v1067 = vmul.f32 %v1063, %v1065
        %1069 = vrot.lane.b32.xlu0 %v1063, 64
        %v1070 = vpop.permute.xlu0 %1069
        %v1072 = vmul.f32 %v1063, %v1070
        %1074 = vrot.lane.b32.xlu0 %v1072, 32
        %v1075 = vpop.permute.xlu0 %1074
        %v1077 = vadd.f32 %v1067, %v1075
        %v1078 = vtanh.pop %v1077
        %1080 = vrot.lane.b32.xlu0 %v1078, 64
        %v1081 = vpop.permute.xlu0 %1080
        %v1083 = vmul.f32 %v1063, %v1081
        %v1085 = vrot.slane %v1083, 4
        %1086 = vrot.lane.b32.xlu0 %v1085, 32
        %v1087 = vpop.permute.xlu0 %1086
        %v1088 = vsel %vm573, %v1087, 0
        %1090 = vmatprep.subr.mxu0 0.0
        %1091 = vmatpush1.msra.mxu0 %v569
        %1092 = vmatprep.subr.mxu0 0.0
        %1093 = vmatpush1.msra.mxu0 %v570
        %1094 = vmatprep.subr.mxu0 0.0
        %1095 = vmatpush1.msra.mxu0 %v571
        %1096 = vmatprep.subr.mxu0 0.0
        %1097 = vmatpush1.msra.mxu0 %v572
        %1098 = vmatprep.subr.mxu0 0.0
        %1099 = vmatpush1.msra.mxu0 0.0
        %1100 = vmatprep.subr.mxu0 0.0
        %1101 = vmatpush1.msra.mxu0 0.0
        %1102 = vmatprep.subr.mxu0 0.0
        %1103 = vmatpush1.msra.mxu0 0.0
        %1104 = vmatprep.subr.mxu0 0.0
        %1105 = vmatpush1.msra.mxu0 0.0
        %1106 = vmatprep.subr.mxu0 0.0
        %1107 = vmatpush1.msra.mxu0 0.0
        %1108 = vmatprep.subr.mxu0 0.0
        %1109 = vmatpush1.msra.mxu0 0.0
        %1110 = vmatprep.subr.mxu0 0.0
        %1111 = vmatpush1.msra.mxu0 0.0
        %1112 = vmatprep.subr.mxu0 0.0
        %1113 = vmatpush1.msra.mxu0 0.0
        %1114 = vmatprep.subr.mxu0 0.0
        %1115 = vmatpush1.msra.mxu0 0.0
        %1116 = vmatprep.subr.mxu0 0.0
        %1117 = vmatpush1.msra.mxu0 0.0
        %1118 = vmatprep.subr.mxu0 0.0
        %1119 = vmatpush1.msra.mxu0 0.0
        %1120 = vmatprep.subr.mxu0 0.0
        %1121 = vmatpush1.msra.mxu0 0.0
        %1122 = vmatprep.subr.mxu0 0.0
        %1123 = vmatpush1.msra.mxu0 0.0
        %1124 = vmatprep.subr.mxu0 0.0
        %1125 = vmatpush1.msra.mxu0 0.0
        %1126 = vmatprep.subr.mxu0 0.0
        %1127 = vmatpush1.msra.mxu0 0.0
        %1128 = vmatprep.subr.mxu0 0.0
        %1129 = vmatpush1.msra.mxu0 0.0
        %1130 = vmatprep.subr.mxu0 0.0
        %1131 = vmatpush1.msra.mxu0 0.0
        %1132 = vmatprep.subr.mxu0 0.0
        %1133 = vmatpush1.msra.mxu0 0.0
        %1134 = vmatprep.subr.mxu0 0.0
        %1135 = vmatpush1.msra.mxu0 0.0
        %1136 = vmatprep.subr.mxu0 0.0
        %1137 = vmatpush1.msra.mxu0 0.0
        %1138 = vmatprep.subr.mxu0 0.0
        %1139 = vmatpush1.msra.mxu0 0.0
        %1140 = vmatprep.subr.mxu0 0.0
        %1141 = vmatpush1.msra.mxu0 0.0
        %1142 = vmatprep.subr.mxu0 0.0
        %1143 = vmatpush1.msra.mxu0 0.0
        %1144 = vmatprep.subr.mxu0 0.0
        %1145 = vmatpush1.msra.mxu0 0.0
        %1146 = vmatprep.subr.mxu0 0.0
        %1147 = vmatpush1.msra.mxu0 0.0
        %1148 = vmatprep.subr.mxu0 0.0
        %1149 = vmatpush1.msra.mxu0 0.0
        %1150 = vmatprep.subr.mxu0 0.0
        %1151 = vmatpush1.msra.mxu0 0.0
        %1152 = vmatprep.subr.mxu0 0.0
        %1153 = vmatpush1.msra.mxu0 0.0
        %1154 = vmatprep.mubr.f32.mxu0 0.0
        %1155 = vmatmul.mubr.f32.gmra.mrb[0].mxu0 %v1088
        %v1156 = vpop.f32.mrb[0].mxu0
        %v1157 = vadd.f32 0.0, %v1156
        %v1158 = vpop.f32.mrb[0].mxu0
        %1159 = vdwg.mxu0
        %v1161 = vrot.slane %v1157, 3
        %v1163 = vadd.f32 %v561, %v1161
        %v1164 = vmul.f32 %v1163, %v567
        %v1165 = vtanh.pop %v1164
        %v1166 = vmul.f32 %v1165, %v567
        %v1167 = vadd.f32 %v1166, %v568
        %v1169 = vrot.slane %v1077, 7
        %v1171 = vmul.f32 %v1167, %v1169
        %1173 = vrot.lane.b32.xlu0 %v1167, 64
        %v1174 = vpop.permute.xlu0 %1173
        %v1176 = vmul.f32 %v1167, %v1174
        %1178 = vrot.lane.b32.xlu0 %v1176, 32
        %v1179 = vpop.permute.xlu0 %1178
        %v1181 = vadd.f32 %v1171, %v1179
        %v1182 = vtanh.pop %v1181
        %1184 = vrot.lane.b32.xlu0 %v1182, 64
        %v1185 = vpop.permute.xlu0 %1184
        %v1187 = vmul.f32 %v1167, %v1185
        %v1189 = vrot.slane %v1187, 5
        %1190 = vrot.lane.b32.xlu0 %v1189, 32
        %v1191 = vpop.permute.xlu0 %1190
        %v1192 = vsel %vm573, %v1191, 0
        %1194 = vmatprep.subr.mxu0 0.0
        %1195 = vmatpush1.msra.mxu0 %v569
        %1196 = vmatprep.subr.mxu0 0.0
        %1197 = vmatpush1.msra.mxu0 %v570
        %1198 = vmatprep.subr.mxu0 0.0
        %1199 = vmatpush1.msra.mxu0 %v571
        %1200 = vmatprep.subr.mxu0 0.0
        %1201 = vmatpush1.msra.mxu0 %v572
        %1202 = vmatprep.subr.mxu0 0.0
        %1203 = vmatpush1.msra.mxu0 0.0
        %1204 = vmatprep.subr.mxu0 0.0
        %1205 = vmatpush1.msra.mxu0 0.0
        %1206 = vmatprep.subr.mxu0 0.0
        %1207 = vmatpush1.msra.mxu0 0.0
        %1208 = vmatprep.subr.mxu0 0.0
        %1209 = vmatpush1.msra.mxu0 0.0
        %1210 = vmatprep.subr.mxu0 0.0
        %1211 = vmatpush1.msra.mxu0 0.0
        %1212 = vmatprep.subr.mxu0 0.0
        %1213 = vmatpush1.msra.mxu0 0.0
        %1214 = vmatprep.subr.mxu0 0.0
        %1215 = vmatpush1.msra.mxu0 0.0
        %1216 = vmatprep.subr.mxu0 0.0
        %1217 = vmatpush1.msra.mxu0 0.0
        %1218 = vmatprep.subr.mxu0 0.0
        %1219 = vmatpush1.msra.mxu0 0.0
        %1220 = vmatprep.subr.mxu0 0.0
        %1221 = vmatpush1.msra.mxu0 0.0
        %1222 = vmatprep.subr.mxu0 0.0
        %1223 = vmatpush1.msra.mxu0 0.0
        %1224 = vmatprep.subr.mxu0 0.0
        %1225 = vmatpush1.msra.mxu0 0.0
        %1226 = vmatprep.subr.mxu0 0.0
        %1227 = vmatpush1.msra.mxu0 0.0
        %1228 = vmatprep.subr.mxu0 0.0
        %1229 = vmatpush1.msra.mxu0 0.0
        %1230 = vmatprep.subr.mxu0 0.0
        %1231 = vmatpush1.msra.mxu0 0.0
        %1232 = vmatprep.subr.mxu0 0.0
        %1233 = vmatpush1.msra.mxu0 0.0
        %1234 = vmatprep.subr.mxu0 0.0
        %1235 = vmatpush1.msra.mxu0 0.0
        %1236 = vmatprep.subr.mxu0 0.0
        %1237 = vmatpush1.msra.mxu0 0.0
        %1238 = vmatprep.subr.mxu0 0.0
        %1239 = vmatpush1.msra.mxu0 0.0
        %1240 = vmatprep.subr.mxu0 0.0
        %1241 = vmatpush1.msra.mxu0 0.0
        %1242 = vmatprep.subr.mxu0 0.0
        %1243 = vmatpush1.msra.mxu0 0.0
        %1244 = vmatprep.subr.mxu0 0.0
        %1245 = vmatpush1.msra.mxu0 0.0
        %1246 = vmatprep.subr.mxu0 0.0
        %1247 = vmatpush1.msra.mxu0 0.0
        %1248 = vmatprep.subr.mxu0 0.0
        %1249 = vmatpush1.msra.mxu0 0.0
        %1250 = vmatprep.subr.mxu0 0.0
        %1251 = vmatpush1.msra.mxu0 0.0
        %1252 = vmatprep.subr.mxu0 0.0
        %1253 = vmatpush1.msra.mxu0 0.0
        %1254 = vmatprep.subr.mxu0 0.0
        %1255 = vmatpush1.msra.mxu0 0.0
        %1256 = vmatprep.subr.mxu0 0.0
        %1257 = vmatpush1.msra.mxu0 0.0
        %1258 = vmatprep.mubr.f32.mxu0 0.0
        %1259 = vmatmul.mubr.f32.gmra.mrb[0].mxu0 %v1192
        %v1260 = vpop.f32.mrb[0].mxu0
        %v1261 = vadd.f32 0.0, %v1260
        %v1262 = vpop.f32.mrb[0].mxu0
        %1263 = vdwg.mxu0
        %v1265 = vrot.slane %v1261, 2
        %v1267 = vadd.f32 %v561, %v1265
        %v1268 = vmul.f32 %v1267, %v567
        %v1269 = vtanh.pop %v1268
        %v1270 = vmul.f32 %v1269, %v567
        %v1271 = vadd.f32 %v1270, %v568
        %v1273 = vrot.slane %v1181, 7
        %v1275 = vmul.f32 %v1271, %v1273
        %1277 = vrot.lane.b32.xlu0 %v1271, 64
        %v1278 = vpop.permute.xlu0 %1277
        %v1280 = vmul.f32 %v1271, %v1278
        %1282 = vrot.lane.b32.xlu0 %v1280, 32
        %v1283 = vpop.permute.xlu0 %1282
        %v1285 = vadd.f32 %v1275, %v1283
        %v1286 = vtanh.pop %v1285
        %1288 = vrot.lane.b32.xlu0 %v1286, 64
        %v1289 = vpop.permute.xlu0 %1288
        %v1291 = vmul.f32 %v1271, %v1289
        %v1293 = vrot.slane %v1291, 6
        %1294 = vrot.lane.b32.xlu0 %v1293, 32
        %v1295 = vpop.permute.xlu0 %1294
        %v1296 = vsel %vm573, %v1295, 0
        %1298 = vmatprep.subr.mxu0 0.0
        %1299 = vmatpush1.msra.mxu0 %v569
        %1300 = vmatprep.subr.mxu0 0.0
        %1301 = vmatpush1.msra.mxu0 %v570
        %1302 = vmatprep.subr.mxu0 0.0
        %1303 = vmatpush1.msra.mxu0 %v571
        %1304 = vmatprep.subr.mxu0 0.0
        %1305 = vmatpush1.msra.mxu0 %v572
        %1306 = vmatprep.subr.mxu0 0.0
        %1307 = vmatpush1.msra.mxu0 0.0
        %1308 = vmatprep.subr.mxu0 0.0
        %1309 = vmatpush1.msra.mxu0 0.0
        %1310 = vmatprep.subr.mxu0 0.0
        %1311 = vmatpush1.msra.mxu0 0.0
        %1312 = vmatprep.subr.mxu0 0.0
        %1313 = vmatpush1.msra.mxu0 0.0
        %1314 = vmatprep.subr.mxu0 0.0
        %1315 = vmatpush1.msra.mxu0 0.0
        %1316 = vmatprep.subr.mxu0 0.0
        %1317 = vmatpush1.msra.mxu0 0.0
        %1318 = vmatprep.subr.mxu0 0.0
        %1319 = vmatpush1.msra.mxu0 0.0
        %1320 = vmatprep.subr.mxu0 0.0
        %1321 = vmatpush1.msra.mxu0 0.0
        %1322 = vmatprep.subr.mxu0 0.0
        %1323 = vmatpush1.msra.mxu0 0.0
        %1324 = vmatprep.subr.mxu0 0.0
        %1325 = vmatpush1.msra.mxu0 0.0
        %1326 = vmatprep.subr.mxu0 0.0
        %1327 = vmatpush1.msra.mxu0 0.0
        %1328 = vmatprep.subr.mxu0 0.0
        %1329 = vmatpush1.msra.mxu0 0.0
        %1330 = vmatprep.subr.mxu0 0.0
        %1331 = vmatpush1.msra.mxu0 0.0
        %1332 = vmatprep.subr.mxu0 0.0
        %1333 = vmatpush1.msra.mxu0 0.0
        %1334 = vmatprep.subr.mxu0 0.0
        %1335 = vmatpush1.msra.mxu0 0.0
        %1336 = vmatprep.subr.mxu0 0.0
        %1337 = vmatpush1.msra.mxu0 0.0
        %1338 = vmatprep.subr.mxu0 0.0
        %1339 = vmatpush1.msra.mxu0 0.0
        %1340 = vmatprep.subr.mxu0 0.0
        %1341 = vmatpush1.msra.mxu0 0.0
        %1342 = vmatprep.subr.mxu0 0.0
        %1343 = vmatpush1.msra.mxu0 0.0
        %1344 = vmatprep.subr.mxu0 0.0
        %1345 = vmatpush1.msra.mxu0 0.0
        %1346 = vmatprep.subr.mxu0 0.0
        %1347 = vmatpush1.msra.mxu0 0.0
        %1348 = vmatprep.subr.mxu0 0.0
        %1349 = vmatpush1.msra.mxu0 0.0
        %1350 = vmatprep.subr.mxu0 0.0
        %1351 = vmatpush1.msra.mxu0 0.0
        %1352 = vmatprep.subr.mxu0 0.0
        %1353 = vmatpush1.msra.mxu0 0.0
        %1354 = vmatprep.subr.mxu0 0.0
        %1355 = vmatpush1.msra.mxu0 0.0
        %1356 = vmatprep.subr.mxu0 0.0
        %1357 = vmatpush1.msra.mxu0 0.0
        %1358 = vmatprep.subr.mxu0 0.0
        %1359 = vmatpush1.msra.mxu0 0.0
        %1360 = vmatprep.subr.mxu0 0.0
        %1361 = vmatpush1.msra.mxu0 0.0
        %1362 = vmatprep.mubr.f32.mxu0 0.0
        %1363 = vmatmul.mubr.f32.gmra.mrb[0].mxu0 %v1296
        %v1364 = vpop.f32.mrb[0].mxu0
        %v1365 = vadd.f32 0.0, %v1364
        %v1366 = vpop.f32.mrb[0].mxu0
        %1367 = vdwg.mxu0
        %v1369 = vrot.slane %v1365, 1
        %v1371 = vadd.f32 %v561, %v1369
        %v1372 = vmul.f32 %v1371, %v567
        %v1373 = vtanh.pop %v1372
        %v1374 = vmul.f32 %v1373, %v567
        %v1375 = vadd.f32 %v1374, %v568
        %v1377 = vrot.slane %v1285, 7
        %v1379 = vmul.f32 %v1375, %v1377
        %1381 = vrot.lane.b32.xlu0 %v1375, 64
        %v1382 = vpop.permute.xlu0 %1381
        %v1384 = vmul.f32 %v1375, %v1382
        %1386 = vrot.lane.b32.xlu0 %v1384, 32
        %v1387 = vpop.permute.xlu0 %1386
        %v1389 = vadd.f32 %v1379, %v1387
        %v1390 = vtanh.pop %v1389
        %1392 = vrot.lane.b32.xlu0 %v1390, 64
        %v1393 = vpop.permute.xlu0 %1392
        %v1395 = vmul.f32 %v1375, %v1393
        %vm1396 = vcmask 1040384
        %v1397 = vsel %vm1396, %v668, %v771
        %vm1398 = vcmask 1041408
        %v1399 = vsel %vm1398, %v1397, %v875
        %vm1400 = vcmask 1042432
        %v1401 = vsel %vm1400, %v1399, %v979
        %vm1402 = vcmask 1043456
        %v1403 = vsel %vm1402, %v1401, %v1083
        %vm1404 = vcmask 1044480
        %v1405 = vsel %vm1404, %v1403, %v1187
        %vm1406 = vcmask 1045504
        %v1407 = vsel %vm1406, %v1405, %v1291
        %vm1408 = vcmask 1046528
        %v1409 = vsel %vm1408, %v1407, %v1395
        %v1410 = vld [vmem:[#allocation5] sm:$0xff]
        %v1411 = vld [vmem:[#allocation5 + $0x8] sm:$0xff]
        %v1412 = vld [vmem:[#allocation5 + $0x10] sm:$0xff]
        %v1413 = vld [vmem:[#allocation5 + $0x18] sm:$0xff]
        %v1414 = vld [vmem:[%s5] sm:$0x1]
        %v1416 = vlaneseq
        %v1417 = vshrl.u32 %v1416, 7
        %v1418 = vsub.s32 0, %v1417
        %v1419 = vrot.slane %v1414, %v1418
        %1422 = vrot.lane.b32.xlu0 %v1409, 32
        %v1423 = vpop.permute.xlu0 %1422
        %v1424 = vsel %vm573, %v1423, 0
        %1426 = vmatprep.subr.mxu0 0.0
        %1427 = vmatpush1.msra.mxu0 %v1410
        %1428 = vmatprep.subr.mxu0 0.0
        %1429 = vmatpush1.msra.mxu0 %v1411
        %1430 = vmatprep.subr.mxu0 0.0
        %1431 = vmatpush1.msra.mxu0 %v1412
        %1432 = vmatprep.subr.mxu0 0.0
        %1433 = vmatpush1.msra.mxu0 %v1413
        %1434 = vmatprep.subr.mxu0 0.0
        %1435 = vmatpush1.msra.mxu0 0.0
        %1436 = vmatprep.subr.mxu0 0.0
        %1437 = vmatpush1.msra.mxu0 0.0
        %1438 = vmatprep.subr.mxu0 0.0
        %1439 = vmatpush1.msra.mxu0 0.0
        %1440 = vmatprep.subr.mxu0 0.0
        %1441 = vmatpush1.msra.mxu0 0.0
        %1442 = vmatprep.subr.mxu0 0.0
        %1443 = vmatpush1.msra.mxu0 0.0
        %1444 = vmatprep.subr.mxu0 0.0
        %1445 = vmatpush1.msra.mxu0 0.0
        %1446 = vmatprep.subr.mxu0 0.0
        %1447 = vmatpush1.msra.mxu0 0.0
        %1448 = vmatprep.subr.mxu0 0.0
        %1449 = vmatpush1.msra.mxu0 0.0
        %1450 = vmatprep.subr.mxu0 0.0
        %1451 = vmatpush1.msra.mxu0 0.0
        %1452 = vmatprep.subr.mxu0 0.0
        %1453 = vmatpush1.msra.mxu0 0.0
        %1454 = vmatprep.subr.mxu0 0.0
        %1455 = vmatpush1.msra.mxu0 0.0
        %1456 = vmatprep.subr.mxu0 0.0
        %1457 = vmatpush1.msra.mxu0 0.0
        %1458 = vmatprep.subr.mxu0 0.0
        %1459 = vmatpush1.msra.mxu0 0.0
        %1460 = vmatprep.subr.mxu0 0.0
        %1461 = vmatpush1.msra.mxu0 0.0
        %1462 = vmatprep.subr.mxu0 0.0
        %1463 = vmatpush1.msra.mxu0 0.0
        %1464 = vmatprep.subr.mxu0 0.0
        %1465 = vmatpush1.msra.mxu0 0.0
        %1466 = vmatprep.subr.mxu0 0.0
        %1467 = vmatpush1.msra.mxu0 0.0
        %1468 = vmatprep.subr.mxu0 0.0
        %1469 = vmatpush1.msra.mxu0 0.0
        %1470 = vmatprep.subr.mxu0 0.0
        %1471 = vmatpush1.msra.mxu0 0.0
        %1472 = vmatprep.subr.mxu0 0.0
        %1473 = vmatpush1.msra.mxu0 0.0
        %1474 = vmatprep.subr.mxu0 0.0
        %1475 = vmatpush1.msra.mxu0 0.0
        %1476 = vmatprep.subr.mxu0 0.0
        %1477 = vmatpush1.msra.mxu0 0.0
        %1478 = vmatprep.subr.mxu0 0.0
        %1479 = vmatpush1.msra.mxu0 0.0
        %1480 = vmatprep.subr.mxu0 0.0
        %1481 = vmatpush1.msra.mxu0 0.0
        %1482 = vmatprep.subr.mxu0 0.0
        %1483 = vmatpush1.msra.mxu0 0.0
        %1484 = vmatprep.subr.mxu0 0.0
        %1485 = vmatpush1.msra.mxu0 0.0
        %1486 = vmatprep.subr.mxu0 0.0
        %1487 = vmatpush1.msra.mxu0 0.0
        %1488 = vmatprep.subr.mxu0 0.0
        %1489 = vmatpush1.msra.mxu0 0.0
        %1490 = vmatprep.mubr.f32.mxu0 0.0
        %1491 = vmatmul.mubr.f32.gmra.mrb[0].mxu0 %v1424
        %v1492 = vpop.f32.mrb[0].mxu0
        %v1493 = vadd.f32 %v1419, %v1492
        %v1494 = vpop.f32.mrb[0].mxu0
        %1495 = vdwg.mxu0
        %v1496 = vld [vmem:[#allocation7] sm:$0xff]
        %v1497 = vld [vmem:[#allocation7 + $0x8] sm:$0xff]
        %v1498 = vld [vmem:[#allocation7 + $0x10] sm:$0xff]
        %v1499 = vld [vmem:[#allocation7 + $0x18] sm:$0xff]
        %1500 = vmatprep.subr.mxu0 0.0
        %1501 = vmatpush1.msra.mxu0 %v1496
        %1502 = vmatprep.subr.mxu0 0.0
        %1503 = vmatpush1.msra.mxu0 %v1497
        %1504 = vmatprep.subr.mxu0 0.0
        %1505 = vmatpush1.msra.mxu0 %v1498
        %1506 = vmatprep.subr.mxu0 0.0
        %1507 = vmatpush1.msra.mxu0 %v1499
        %1508 = vmatprep.subr.mxu0 0.0
        %1509 = vmatpush1.msra.mxu0 0.0
        %1510 = vmatprep.subr.mxu0 0.0
        %1511 = vmatpush1.msra.mxu0 0.0
        %1512 = vmatprep.subr.mxu0 0.0
        %1513 = vmatpush1.msra.mxu0 0.0
        %1514 = vmatprep.subr.mxu0 0.0
        %1515 = vmatpush1.msra.mxu0 0.0
        %1516 = vmatprep.subr.mxu0 0.0
        %1517 = vmatpush1.msra.mxu0 0.0
        %1518 = vmatprep.subr.mxu0 0.0
        %1519 = vmatpush1.msra.mxu0 0.0
        %1520 = vmatprep.subr.mxu0 0.0
        %1521 = vmatpush1.msra.mxu0 0.0
        %1522 = vmatprep.subr.mxu0 0.0
        %1523 = vmatpush1.msra.mxu0 0.0
        %1524 = vmatprep.subr.mxu0 0.0
        %1525 = vmatpush1.msra.mxu0 0.0
        %1526 = vmatprep.subr.mxu0 0.0
        %1527 = vmatpush1.msra.mxu0 0.0
        %1528 = vmatprep.subr.mxu0 0.0
        %1529 = vmatpush1.msra.mxu0 0.0
        %1530 = vmatprep.subr.mxu0 0.0
        %1531 = vmatpush1.msra.mxu0 0.0
        %1532 = vmatprep.subr.mxu0 0.0
        %1533 = vmatpush1.msra.mxu0 0.0
        %1534 = vmatprep.subr.mxu0 0.0
        %1535 = vmatpush1.msra.mxu0 0.0
        %1536 = vmatprep.subr.mxu0 0.0
        %1537 = vmatpush1.msra.mxu0 0.0
        %1538 = vmatprep.subr.mxu0 0.0
        %1539 = vmatpush1.msra.mxu0 0.0
        %1540 = vmatprep.subr.mxu0 0.0
        %1541 = vmatpush1.msra.mxu0 0.0
        %1542 = vmatprep.subr.mxu0 0.0
        %1543 = vmatpush1.msra.mxu0 0.0
        %1544 = vmatprep.subr.mxu0 0.0
        %1545 = vmatpush1.msra.mxu0 0.0
        %1546 = vmatprep.subr.mxu0 0.0
        %1547 = vmatpush1.msra.mxu0 0.0
        %1548 = vmatprep.subr.mxu0 0.0
        %1549 = vmatpush1.msra.mxu0 0.0
        %1550 = vmatprep.subr.mxu0 0.0
        %1551 = vmatpush1.msra.mxu0 0.0
        %1552 = vmatprep.subr.mxu0 0.0
        %1553 = vmatpush1.msra.mxu0 0.0
        %1554 = vmatprep.subr.mxu0 0.0
        %1555 = vmatpush1.msra.mxu0 0.0
        %1556 = vmatprep.subr.mxu0 0.0
        %1557 = vmatpush1.msra.mxu0 0.0
        %1558 = vmatprep.subr.mxu0 0.0
        %1559 = vmatpush1.msra.mxu0 0.0
        %1560 = vmatprep.subr.mxu0 0.0
        %1561 = vmatpush1.msra.mxu0 0.0
        %1562 = vmatprep.subr.mxu0 0.0
        %1563 = vmatpush1.msra.mxu0 0.0
        %1564 = vmatprep.mubr.f32.mxu0 0.0
        %1565 = vmatmul.mubr.f32.gmra.mrb[0].mxu0 %v575
        %v1566 = vpop.f32.mrb[0].mxu0
        %v1567 = vadd.f32 0.0, %v1566
        %v1568 = vpop.f32.mrb[0].mxu0
        %1569 = vdwg.mxu0
        %v1570 = vadd.f32 %v1493, %v1567
        %v1571 = vmul.f32 %v1570, %v567
        %v1572 = vtanh.pop %v1571
        %v1573 = vmul.f32 %v1572, %v567
        %v1574 = vadd.f32 %v1573, %v568
        %v1575 = vmul.f32 %v1574, 0.0
        %1577 = vrot.lane.b32.xlu0 %v1574, 64
        %v1578 = vpop.permute.xlu0 %1577
        %v1580 = vmul.f32 %v1574, %v1578
        %1582 = vrot.lane.b32.xlu0 %v1580, 32
        %v1583 = vpop.permute.xlu0 %1582
        %v1585 = vadd.f32 %v1575, %v1583
        %v1586 = vtanh.pop %v1585
        %1588 = vrot.lane.b32.xlu0 %v1586, 64
        %v1589 = vpop.permute.xlu0 %1588
        %v1591 = vmul.f32 %v1574, %v1589
        %1593 = vrot.lane.b32.xlu0 %v1591, 32
        %v1594 = vpop.permute.xlu0 %1593
        %v1595 = vsel %vm573, %v1594, 0
        %1597 = vmatprep.subr.mxu0 0.0
        %1598 = vmatpush1.msra.mxu0 %v1496
        %1599 = vmatprep.subr.mxu0 0.0
        %1600 = vmatpush1.msra.mxu0 %v1497
        %1601 = vmatprep.subr.mxu0 0.0
        %1602 = vmatpush1.msra.mxu0 %v1498
        %1603 = vmatprep.subr.mxu0 0.0
        %1604 = vmatpush1.msra.mxu0 %v1499
        %1605 = vmatprep.subr.mxu0 0.0
        %1606 = vmatpush1.msra.mxu0 0.0
        %1607 = vmatprep.subr.mxu0 0.0
        %1608 = vmatpush1.msra.mxu0 0.0
        %1609 = vmatprep.subr.mxu0 0.0
        %1610 = vmatpush1.msra.mxu0 0.0
        %1611 = vmatprep.subr.mxu0 0.0
        %1612 = vmatpush1.msra.mxu0 0.0
        %1613 = vmatprep.subr.mxu0 0.0
        %1614 = vmatpush1.msra.mxu0 0.0
        %1615 = vmatprep.subr.mxu0 0.0
        %1616 = vmatpush1.msra.mxu0 0.0
        %1617 = vmatprep.subr.mxu0 0.0
        %1618 = vmatpush1.msra.mxu0 0.0
        %1619 = vmatprep.subr.mxu0 0.0
        %1620 = vmatpush1.msra.mxu0 0.0
        %1621 = vmatprep.subr.mxu0 0.0
        %1622 = vmatpush1.msra.mxu0 0.0
        %1623 = vmatprep.subr.mxu0 0.0
        %1624 = vmatpush1.msra.mxu0 0.0
        %1625 = vmatprep.subr.mxu0 0.0
        %1626 = vmatpush1.msra.mxu0 0.0
        %1627 = vmatprep.subr.mxu0 0.0
        %1628 = vmatpush1.msra.mxu0 0.0
        %1629 = vmatprep.subr.mxu0 0.0
        %1630 = vmatpush1.msra.mxu0 0.0
        %1631 = vmatprep.subr.mxu0 0.0
        %1632 = vmatpush1.msra.mxu0 0.0
        %1633 = vmatprep.subr.mxu0 0.0
        %1634 = vmatpush1.msra.mxu0 0.0
        %1635 = vmatprep.subr.mxu0 0.0
        %1636 = vmatpush1.msra.mxu0 0.0
        %1637 = vmatprep.subr.mxu0 0.0
        %1638 = vmatpush1.msra.mxu0 0.0
        %1639 = vmatprep.subr.mxu0 0.0
        %1640 = vmatpush1.msra.mxu0 0.0
        %1641 = vmatprep.subr.mxu0 0.0
        %1642 = vmatpush1.msra.mxu0 0.0
        %1643 = vmatprep.subr.mxu0 0.0
        %1644 = vmatpush1.msra.mxu0 0.0
        %1645 = vmatprep.subr.mxu0 0.0
        %1646 = vmatpush1.msra.mxu0 0.0
        %1647 = vmatprep.subr.mxu0 0.0
        %1648 = vmatpush1.msra.mxu0 0.0
        %1649 = vmatprep.subr.mxu0 0.0
        %1650 = vmatpush1.msra.mxu0 0.0
        %1651 = vmatprep.subr.mxu0 0.0
        %1652 = vmatpush1.msra.mxu0 0.0
        %1653 = vmatprep.subr.mxu0 0.0
        %1654 = vmatpush1.msra.mxu0 0.0
        %1655 = vmatprep.subr.mxu0 0.0
        %1656 = vmatpush1.msra.mxu0 0.0
        %1657 = vmatprep.subr.mxu0 0.0
        %1658 = vmatpush1.msra.mxu0 0.0
        %1659 = vmatprep.subr.mxu0 0.0
        %1660 = vmatpush1.msra.mxu0 0.0
        %1661 = vmatprep.mubr.f32.mxu0 0.0
        %1662 = vmatmul.mubr.f32.gmra.mrb[0].mxu0 %v1595
        %v1663 = vpop.f32.mrb[0].mxu0
        %v1664 = vadd.f32 0.0, %v1663
        %v1665 = vpop.f32.mrb[0].mxu0
        %1666 = vdwg.mxu0
        %v1668 = vrot.slane %v1664, 7
        %v1670 = vadd.f32 %v1493, %v1668
        %v1671 = vmul.f32 %v1670, %v567
        %v1672 = vtanh.pop %v1671
        %v1673 = vmul.f32 %v1672, %v567
        %v1674 = vadd.f32 %v1673, %v568
        %v1676 = vrot.slane %v1585, 7
        %v1678 = vmul.f32 %v1674, %v1676
        %1680 = vrot.lane.b32.xlu0 %v1674, 64
        %v1681 = vpop.permute.xlu0 %1680
        %v1683 = vmul.f32 %v1674, %v1681
        %1685 = vrot.lane.b32.xlu0 %v1683, 32
        %v1686 = vpop.permute.xlu0 %1685
        %v1688 = vadd.f32 %v1678, %v1686
        %v1689 = vtanh.pop %v1688
        %1691 = vrot.lane.b32.xlu0 %v1689, 64
        %v1692 = vpop.permute.xlu0 %1691
        %v1694 = vmul.f32 %v1674, %v1692
        %v1696 = vrot.slane %v1694, 1
        %1697 = vrot.lane.b32.xlu0 %v1696, 32
        %v1698 = vpop.permute.xlu0 %1697
        %v1699 = vsel %vm573, %v1698, 0
        %1701 = vmatprep.subr.mxu0 0.0
        %1702 = vmatpush1.msra.mxu0 %v1496
        %1703 = vmatprep.subr.mxu0 0.0
        %1704 = vmatpush1.msra.mxu0 %v1497
        %1705 = vmatprep.subr.mxu0 0.0
        %1706 = vmatpush1.msra.mxu0 %v1498
        %1707 = vmatprep.subr.mxu0 0.0
        %1708 = vmatpush1.msra.mxu0 %v1499
        %1709 = vmatprep.subr.mxu0 0.0
        %1710 = vmatpush1.msra.mxu0 0.0
        %1711 = vmatprep.subr.mxu0 0.0
        %1712 = vmatpush1.msra.mxu0 0.0
        %1713 = vmatprep.subr.mxu0 0.0
        %1714 = vmatpush1.msra.mxu0 0.0
        %1715 = vmatprep.subr.mxu0 0.0
        %1716 = vmatpush1.msra.mxu0 0.0
        %1717 = vmatprep.subr.mxu0 0.0
        %1718 = vmatpush1.msra.mxu0 0.0
        %1719 = vmatprep.subr.mxu0 0.0
        %1720 = vmatpush1.msra.mxu0 0.0
        %1721 = vmatprep.subr.mxu0 0.0
        %1722 = vmatpush1.msra.mxu0 0.0
        %1723 = vmatprep.subr.mxu0 0.0
        %1724 = vmatpush1.msra.mxu0 0.0
        %1725 = vmatprep.subr.mxu0 0.0
        %1726 = vmatpush1.msra.mxu0 0.0
        %1727 = vmatprep.subr.mxu0 0.0
        %1728 = vmatpush1.msra.mxu0 0.0
        %1729 = vmatprep.subr.mxu0 0.0
        %1730 = vmatpush1.msra.mxu0 0.0
        %1731 = vmatprep.subr.mxu0 0.0
        %1732 = vmatpush1.msra.mxu0 0.0
        %1733 = vmatprep.subr.mxu0 0.0
        %1734 = vmatpush1.msra.mxu0 0.0
        %1735 = vmatprep.subr.mxu0 0.0
        %1736 = vmatpush1.msra.mxu0 0.0
        %1737 = vmatprep.subr.mxu0 0.0
        %1738 = vmatpush1.msra.mxu0 0.0
        %1739 = vmatprep.subr.mxu0 0.0
        %1740 = vmatpush1.msra.mxu0 0.0
        %1741 = vmatprep.subr.mxu0 0.0
        %1742 = vmatpush1.msra.mxu0 0.0
        %1743 = vmatprep.subr.mxu0 0.0
        %1744 = vmatpush1.msra.mxu0 0.0
        %1745 = vmatprep.subr.mxu0 0.0
        %1746 = vmatpush1.msra.mxu0 0.0
        %1747 = vmatprep.subr.mxu0 0.0
        %1748 = vmatpush1.msra.mxu0 0.0
        %1749 = vmatprep.subr.mxu0 0.0
        %1750 = vmatpush1.msra.mxu0 0.0
        %1751 = vmatprep.subr.mxu0 0.0
        %1752 = vmatpush1.msra.mxu0 0.0
        %1753 = vmatprep.subr.mxu0 0.0
        %1754 = vmatpush1.msra.mxu0 0.0
        %1755 = vmatprep.subr.mxu0 0.0
        %1756 = vmatpush1.msra.mxu0 0.0
        %1757 = vmatprep.subr.mxu0 0.0
        %1758 = vmatpush1.msra.mxu0 0.0
        %1759 = vmatprep.subr.mxu0 0.0
        %1760 = vmatpush1.msra.mxu0 0.0
        %1761 = vmatprep.subr.mxu0 0.0
        %1762 = vmatpush1.msra.mxu0 0.0
        %1763 = vmatprep.subr.mxu0 0.0
        %1764 = vmatpush1.msra.mxu0 0.0
        %1765 = vmatprep.mubr.f32.mxu0 0.0
        %1766 = vmatmul.mubr.f32.gmra.mrb[0].mxu0 %v1699
        %v1767 = vpop.f32.mrb[0].mxu0
        %v1768 = vadd.f32 0.0, %v1767
        %v1769 = vpop.f32.mrb[0].mxu0
        %1770 = vdwg.mxu0
        %v1772 = vrot.slane %v1768, 6
        %v1774 = vadd.f32 %v1493, %v1772
        %v1775 = vmul.f32 %v1774, %v567
        %v1776 = vtanh.pop %v1775
        %v1777 = vmul.f32 %v1776, %v567
        %v1778 = vadd.f32 %v1777, %v568
        %v1780 = vrot.slane %v1688, 7
        %v1782 = vmul.f32 %v1778, %v1780
        %1784 = vrot.lane.b32.xlu0 %v1778, 64
        %v1785 = vpop.permute.xlu0 %1784
        %v1787 = vmul.f32 %v1778, %v1785
        %1789 = vrot.lane.b32.xlu0 %v1787, 32
        %v1790 = vpop.permute.xlu0 %1789
        %v1792 = vadd.f32 %v1782, %v1790
        %v1793 = vtanh.pop %v1792
        %1795 = vrot.lane.b32.xlu0 %v1793, 64
        %v1796 = vpop.permute.xlu0 %1795
        %v1798 = vmul.f32 %v1778, %v1796
        %v1800 = vrot.slane %v1798, 2
        %1801 = vrot.lane.b32.xlu0 %v1800, 32
        %v1802 = vpop.permute.xlu0 %1801
        %v1803 = vsel %vm573, %v1802, 0
        %1805 = vmatprep.subr.mxu0 0.0
        %1806 = vmatpush1.msra.mxu0 %v1496
        %1807 = vmatprep.subr.mxu0 0.0
        %1808 = vmatpush1.msra.mxu0 %v1497
        %1809 = vmatprep.subr.mxu0 0.0
        %1810 = vmatpush1.msra.mxu0 %v1498
        %1811 = vmatprep.subr.mxu0 0.0
        %1812 = vmatpush1.msra.mxu0 %v1499
        %1813 = vmatprep.subr.mxu0 0.0
        %1814 = vmatpush1.msra.mxu0 0.0
        %1815 = vmatprep.subr.mxu0 0.0
        %1816 = vmatpush1.msra.mxu0 0.0
        %1817 = vmatprep.subr.mxu0 0.0
        %1818 = vmatpush1.msra.mxu0 0.0
        %1819 = vmatprep.subr.mxu0 0.0
        %1820 = vmatpush1.msra.mxu0 0.0
        %1821 = vmatprep.subr.mxu0 0.0
        %1822 = vmatpush1.msra.mxu0 0.0
        %1823 = vmatprep.subr.mxu0 0.0
        %1824 = vmatpush1.msra.mxu0 0.0
        %1825 = vmatprep.subr.mxu0 0.0
        %1826 = vmatpush1.msra.mxu0 0.0
        %1827 = vmatprep.subr.mxu0 0.0
        %1828 = vmatpush1.msra.mxu0 0.0
        %1829 = vmatprep.subr.mxu0 0.0
        %1830 = vmatpush1.msra.mxu0 0.0
        %1831 = vmatprep.subr.mxu0 0.0
        %1832 = vmatpush1.msra.mxu0 0.0
        %1833 = vmatprep.subr.mxu0 0.0
        %1834 = vmatpush1.msra.mxu0 0.0
        %1835 = vmatprep.subr.mxu0 0.0
        %1836 = vmatpush1.msra.mxu0 0.0
        %1837 = vmatprep.subr.mxu0 0.0
        %1838 = vmatpush1.msra.mxu0 0.0
        %1839 = vmatprep.subr.mxu0 0.0
        %1840 = vmatpush1.msra.mxu0 0.0
        %1841 = vmatprep.subr.mxu0 0.0
        %1842 = vmatpush1.msra.mxu0 0.0
        %1843 = vmatprep.subr.mxu0 0.0
        %1844 = vmatpush1.msra.mxu0 0.0
        %1845 = vmatprep.subr.mxu0 0.0
        %1846 = vmatpush1.msra.mxu0 0.0
        %1847 = vmatprep.subr.mxu0 0.0
        %1848 = vmatpush1.msra.mxu0 0.0
        %1849 = vmatprep.subr.mxu0 0.0
        %1850 = vmatpush1.msra.mxu0 0.0
        %1851 = vmatprep.subr.mxu0 0.0
        %1852 = vmatpush1.msra.mxu0 0.0
        %1853 = vmatprep.subr.mxu0 0.0
        %1854 = vmatpush1.msra.mxu0 0.0
        %1855 = vmatprep.subr.mxu0 0.0
        %1856 = vmatpush1.msra.mxu0 0.0
        %1857 = vmatprep.subr.mxu0 0.0
        %1858 = vmatpush1.msra.mxu0 0.0
        %1859 = vmatprep.subr.mxu0 0.0
        %1860 = vmatpush1.msra.mxu0 0.0
        %1861 = vmatprep.subr.mxu0 0.0
        %1862 = vmatpush1.msra.mxu0 0.0
        %1863 = vmatprep.subr.mxu0 0.0
        %1864 = vmatpush1.msra.mxu0 0.0
        %1865 = vmatprep.subr.mxu0 0.0
        %1866 = vmatpush1.msra.mxu0 0.0
        %1867 = vmatprep.subr.mxu0 0.0
        %1868 = vmatpush1.msra.mxu0 0.0
        %1869 = vmatprep.mubr.f32.mxu0 0.0
        %1870 = vmatmul.mubr.f32.gmra.mrb[0].mxu0 %v1803
        %v1871 = vpop.f32.mrb[0].mxu0
        %v1872 = vadd.f32 0.0, %v1871
        %v1873 = vpop.f32.mrb[0].mxu0
        %1874 = vdwg.mxu0
        %v1876 = vrot.slane %v1872, 5
        %v1878 = vadd.f32 %v1493, %v1876
        %v1879 = vmul.f32 %v1878, %v567
        %v1880 = vtanh.pop %v1879
        %v1881 = vmul.f32 %v1880, %v567
        %v1882 = vadd.f32 %v1881, %v568
        %v1884 = vrot.slane %v1792, 7
        %v1886 = vmul.f32 %v1882, %v1884
        %1888 = vrot.lane.b32.xlu0 %v1882, 64
        %v1889 = vpop.permute.xlu0 %1888
        %v1891 = vmul.f32 %v1882, %v1889
        %1893 = vrot.lane.b32.xlu0 %v1891, 32
        %v1894 = vpop.permute.xlu0 %1893
        %v1896 = vadd.f32 %v1886, %v1894
        %v1897 = vtanh.pop %v1896
        %1899 = vrot.lane.b32.xlu0 %v1897, 64
        %v1900 = vpop.permute.xlu0 %1899
        %v1902 = vmul.f32 %v1882, %v1900
        %v1904 = vrot.slane %v1902, 3
        %1905 = vrot.lane.b32.xlu0 %v1904, 32
        %v1906 = vpop.permute.xlu0 %1905
        %v1907 = vsel %vm573, %v1906, 0
        %1909 = vmatprep.subr.mxu0 0.0
        %1910 = vmatpush1.msra.mxu0 %v1496
        %1911 = vmatprep.subr.mxu0 0.0
        %1912 = vmatpush1.msra.mxu0 %v1497
        %1913 = vmatprep.subr.mxu0 0.0
        %1914 = vmatpush1.msra.mxu0 %v1498
        %1915 = vmatprep.subr.mxu0 0.0
        %1916 = vmatpush1.msra.mxu0 %v1499
        %1917 = vmatprep.subr.mxu0 0.0
        %1918 = vmatpush1.msra.mxu0 0.0
        %1919 = vmatprep.subr.mxu0 0.0
        %1920 = vmatpush1.msra.mxu0 0.0
        %1921 = vmatprep.subr.mxu0 0.0
        %1922 = vmatpush1.msra.mxu0 0.0
        %1923 = vmatprep.subr.mxu0 0.0
        %1924 = vmatpush1.msra.mxu0 0.0
        %1925 = vmatprep.subr.mxu0 0.0
        %1926 = vmatpush1.msra.mxu0 0.0
        %1927 = vmatprep.subr.mxu0 0.0
        %1928 = vmatpush1.msra.mxu0 0.0
        %1929 = vmatprep.subr.mxu0 0.0
        %1930 = vmatpush1.msra.mxu0 0.0
        %1931 = vmatprep.subr.mxu0 0.0
        %1932 = vmatpush1.msra.mxu0 0.0
        %1933 = vmatprep.subr.mxu0 0.0
        %1934 = vmatpush1.msra.mxu0 0.0
        %1935 = vmatprep.subr.mxu0 0.0
        %1936 = vmatpush1.msra.mxu0 0.0
        %1937 = vmatprep.subr.mxu0 0.0
        %1938 = vmatpush1.msra.mxu0 0.0
        %1939 = vmatprep.subr.mxu0 0.0
        %1940 = vmatpush1.msra.mxu0 0.0
        %1941 = vmatprep.subr.mxu0 0.0
        %1942 = vmatpush1.msra.mxu0 0.0
        %1943 = vmatprep.subr.mxu0 0.0
        %1944 = vmatpush1.msra.mxu0 0.0
        %1945 = vmatprep.subr.mxu0 0.0
        %1946 = vmatpush1.msra.mxu0 0.0
        %1947 = vmatprep.subr.mxu0 0.0
        %1948 = vmatpush1.msra.mxu0 0.0
        %1949 = vmatprep.subr.mxu0 0.0
        %1950 = vmatpush1.msra.mxu0 0.0
        %1951 = vmatprep.subr.mxu0 0.0
        %1952 = vmatpush1.msra.mxu0 0.0
        %1953 = vmatprep.subr.mxu0 0.0
        %1954 = vmatpush1.msra.mxu0 0.0
        %1955 = vmatprep.subr.mxu0 0.0
        %1956 = vmatpush1.msra.mxu0 0.0
        %1957 = vmatprep.subr.mxu0 0.0
        %1958 = vmatpush1.msra.mxu0 0.0
        %1959 = vmatprep.subr.mxu0 0.0
        %1960 = vmatpush1.msra.mxu0 0.0
        %1961 = vmatprep.subr.mxu0 0.0
        %1962 = vmatpush1.msra.mxu0 0.0
        %1963 = vmatprep.subr.mxu0 0.0
        %1964 = vmatpush1.msra.mxu0 0.0
        %1965 = vmatprep.subr.mxu0 0.0
        %1966 = vmatpush1.msra.mxu0 0.0
        %1967 = vmatprep.subr.mxu0 0.0
        %1968 = vmatpush1.msra.mxu0 0.0
        %1969 = vmatprep.subr.mxu0 0.0
        %1970 = vmatpush1.msra.mxu0 0.0
        %1971 = vmatprep.subr.mxu0 0.0
        %1972 = vmatpush1.msra.mxu0 0.0
        %1973 = vmatprep.mubr.f32.mxu0 0.0
        %1974 = vmatmul.mubr.f32.gmra.mrb[0].mxu0 %v1907
        %v1975 = vpop.f32.mrb[0].mxu0
        %v1976 = vadd.f32 0.0, %v1975
        %v1977 = vpop.f32.mrb[0].mxu0
        %1978 = vdwg.mxu0
        %v1980 = vrot.slane %v1976, 4
        %v1982 = vadd.f32 %v1493, %v1980
        %v1983 = vmul.f32 %v1982, %v567
        %v1984 = vtanh.pop %v1983
        %v1985 = vmul.f32 %v1984, %v567
        %v1986 = vadd.f32 %v1985, %v568
        %v1988 = vrot.slane %v1896, 7
        %v1990 = vmul.f32 %v1986, %v1988
        %1992 = vrot.lane.b32.xlu0 %v1986, 64
        %v1993 = vpop.permute.xlu0 %1992
        %v1995 = vmul.f32 %v1986, %v1993
        %1997 = vrot.lane.b32.xlu0 %v1995, 32
        %v1998 = vpop.permute.xlu0 %1997
        %v2000 = vadd.f32 %v1990, %v1998
        %v2001 = vtanh.pop %v2000
        %2003 = vrot.lane.b32.xlu0 %v2001, 64
        %v2004 = vpop.permute.xlu0 %2003
        %v2006 = vmul.f32 %v1986, %v2004
        %v2008 = vrot.slane %v2006, 4
        %2009 = vrot.lane.b32.xlu0 %v2008, 32
        %v2010 = vpop.permute.xlu0 %2009
        %v2011 = vsel %vm573, %v2010, 0
        %2013 = vmatprep.subr.mxu0 0.0
        %2014 = vmatpush1.msra.mxu0 %v1496
        %2015 = vmatprep.subr.mxu0 0.0
        %2016 = vmatpush1.msra.mxu0 %v1497
        %2017 = vmatprep.subr.mxu0 0.0
        %2018 = vmatpush1.msra.mxu0 %v1498
        %2019 = vmatprep.subr.mxu0 0.0
        %2020 = vmatpush1.msra.mxu0 %v1499
        %2021 = vmatprep.subr.mxu0 0.0
        %2022 = vmatpush1.msra.mxu0 0.0
        %2023 = vmatprep.subr.mxu0 0.0
        %2024 = vmatpush1.msra.mxu0 0.0
        %2025 = vmatprep.subr.mxu0 0.0
        %2026 = vmatpush1.msra.mxu0 0.0
        %2027 = vmatprep.subr.mxu0 0.0
        %2028 = vmatpush1.msra.mxu0 0.0
        %2029 = vmatprep.subr.mxu0 0.0
        %2030 = vmatpush1.msra.mxu0 0.0
        %2031 = vmatprep.subr.mxu0 0.0
        %2032 = vmatpush1.msra.mxu0 0.0
        %2033 = vmatprep.subr.mxu0 0.0
        %2034 = vmatpush1.msra.mxu0 0.0
        %2035 = vmatprep.subr.mxu0 0.0
        %2036 = vmatpush1.msra.mxu0 0.0
        %2037 = vmatprep.subr.mxu0 0.0
        %2038 = vmatpush1.msra.mxu0 0.0
        %2039 = vmatprep.subr.mxu0 0.0
        %2040 = vmatpush1.msra.mxu0 0.0
        %2041 = vmatprep.subr.mxu0 0.0
        %2042 = vmatpush1.msra.mxu0 0.0
        %2043 = vmatprep.subr.mxu0 0.0
        %2044 = vmatpush1.msra.mxu0 0.0
        %2045 = vmatprep.subr.mxu0 0.0
        %2046 = vmatpush1.msra.mxu0 0.0
        %2047 = vmatprep.subr.mxu0 0.0
        %2048 = vmatpush1.msra.mxu0 0.0
        %2049 = vmatprep.subr.mxu0 0.0
        %2050 = vmatpush1.msra.mxu0 0.0
        %2051 = vmatprep.subr.mxu0 0.0
        %2052 = vmatpush1.msra.mxu0 0.0
        %2053 = vmatprep.subr.mxu0 0.0
        %2054 = vmatpush1.msra.mxu0 0.0
        %2055 = vmatprep.subr.mxu0 0.0
        %2056 = vmatpush1.msra.mxu0 0.0
        %2057 = vmatprep.subr.mxu0 0.0
        %2058 = vmatpush1.msra.mxu0 0.0
        %2059 = vmatprep.subr.mxu0 0.0
        %2060 = vmatpush1.msra.mxu0 0.0
        %2061 = vmatprep.subr.mxu0 0.0
        %2062 = vmatpush1.msra.mxu0 0.0
        %2063 = vmatprep.subr.mxu0 0.0
        %2064 = vmatpush1.msra.mxu0 0.0
        %2065 = vmatprep.subr.mxu0 0.0
        %2066 = vmatpush1.msra.mxu0 0.0
        %2067 = vmatprep.subr.mxu0 0.0
        %2068 = vmatpush1.msra.mxu0 0.0
        %2069 = vmatprep.subr.mxu0 0.0
        %2070 = vmatpush1.msra.mxu0 0.0
        %2071 = vmatprep.subr.mxu0 0.0
        %2072 = vmatpush1.msra.mxu0 0.0
        %2073 = vmatprep.subr.mxu0 0.0
        %2074 = vmatpush1.msra.mxu0 0.0
        %2075 = vmatprep.subr.mxu0 0.0
        %2076 = vmatpush1.msra.mxu0 0.0
        %2077 = vmatprep.mubr.f32.mxu0 0.0
        %2078 = vmatmul.mubr.f32.gmra.mrb[0].mxu0 %v2011
        %v2079 = vpop.f32.mrb[0].mxu0
        %v2080 = vadd.f32 0.0, %v2079
        %v2081 = vpop.f32.mrb[0].mxu0
        %2082 = vdwg.mxu0
        %v2084 = vrot.slane %v2080, 3
        %v2086 = vadd.f32 %v1493, %v2084
        %v2087 = vmul.f32 %v2086, %v567
        %v2088 = vtanh.pop %v2087
        %v2089 = vmul.f32 %v2088, %v567
        %v2090 = vadd.f32 %v2089, %v568
        %v2092 = vrot.slane %v2000, 7
        %v2094 = vmul.f32 %v2090, %v2092
        %2096 = vrot.lane.b32.xlu0 %v2090, 64
        %v2097 = vpop.permute.xlu0 %2096
        %v2099 = vmul.f32 %v2090, %v2097
        %2101 = vrot.lane.b32.xlu0 %v2099, 32
        %v2102 = vpop.permute.xlu0 %2101
        %v2104 = vadd.f32 %v2094, %v2102
        %v2105 = vtanh.pop %v2104
        %2107 = vrot.lane.b32.xlu0 %v2105, 64
        %v2108 = vpop.permute.xlu0 %2107
        %v2110 = vmul.f32 %v2090, %v2108
        %v2112 = vrot.slane %v2110, 5
        %2113 = vrot.lane.b32.xlu0 %v2112, 32
        %v2114 = vpop.permute.xlu0 %2113
        %v2115 = vsel %vm573, %v2114, 0
        %2117 = vmatprep.subr.mxu0 0.0
        %2118 = vmatpush1.msra.mxu0 %v1496
        %2119 = vmatprep.subr.mxu0 0.0
        %2120 = vmatpush1.msra.mxu0 %v1497
        %2121 = vmatprep.subr.mxu0 0.0
        %2122 = vmatpush1.msra.mxu0 %v1498
        %2123 = vmatprep.subr.mxu0 0.0
        %2124 = vmatpush1.msra.mxu0 %v1499
        %2125 = vmatprep.subr.mxu0 0.0
        %2126 = vmatpush1.msra.mxu0 0.0
        %2127 = vmatprep.subr.mxu0 0.0
        %2128 = vmatpush1.msra.mxu0 0.0
        %2129 = vmatprep.subr.mxu0 0.0
        %2130 = vmatpush1.msra.mxu0 0.0
        %2131 = vmatprep.subr.mxu0 0.0
        %2132 = vmatpush1.msra.mxu0 0.0
        %2133 = vmatprep.subr.mxu0 0.0
        %2134 = vmatpush1.msra.mxu0 0.0
        %2135 = vmatprep.subr.mxu0 0.0
        %2136 = vmatpush1.msra.mxu0 0.0
        %2137 = vmatprep.subr.mxu0 0.0
        %2138 = vmatpush1.msra.mxu0 0.0
        %2139 = vmatprep.subr.mxu0 0.0
        %2140 = vmatpush1.msra.mxu0 0.0
        %2141 = vmatprep.subr.mxu0 0.0
        %2142 = vmatpush1.msra.mxu0 0.0
        %2143 = vmatprep.subr.mxu0 0.0
        %2144 = vmatpush1.msra.mxu0 0.0
        %2145 = vmatprep.subr.mxu0 0.0
        %2146 = vmatpush1.msra.mxu0 0.0
        %2147 = vmatprep.subr.mxu0 0.0
        %2148 = vmatpush1.msra.mxu0 0.0
        %2149 = vmatprep.subr.mxu0 0.0
        %2150 = vmatpush1.msra.mxu0 0.0
        %2151 = vmatprep.subr.mxu0 0.0
        %2152 = vmatpush1.msra.mxu0 0.0
        %2153 = vmatprep.subr.mxu0 0.0
        %2154 = vmatpush1.msra.mxu0 0.0
        %2155 = vmatprep.subr.mxu0 0.0
        %2156 = vmatpush1.msra.mxu0 0.0
        %2157 = vmatprep.subr.mxu0 0.0
        %2158 = vmatpush1.msra.mxu0 0.0
        %2159 = vmatprep.subr.mxu0 0.0
        %2160 = vmatpush1.msra.mxu0 0.0
        %2161 = vmatprep.subr.mxu0 0.0
        %2162 = vmatpush1.msra.mxu0 0.0
        %2163 = vmatprep.subr.mxu0 0.0
        %2164 = vmatpush1.msra.mxu0 0.0
        %2165 = vmatprep.subr.mxu0 0.0
        %2166 = vmatpush1.msra.mxu0 0.0
        %2167 = vmatprep.subr.mxu0 0.0
        %2168 = vmatpush1.msra.mxu0 0.0
        %2169 = vmatprep.subr.mxu0 0.0
        %2170 = vmatpush1.msra.mxu0 0.0
        %2171 = vmatprep.subr.mxu0 0.0
        %2172 = vmatpush1.msra.mxu0 0.0
        %2173 = vmatprep.subr.mxu0 0.0
        %2174 = vmatpush1.msra.mxu0 0.0
        %2175 = vmatprep.subr.mxu0 0.0
        %2176 = vmatpush1.msra.mxu0 0.0
        %2177 = vmatprep.subr.mxu0 0.0
        %2178 = vmatpush1.msra.mxu0 0.0
        %2179 = vmatprep.subr.mxu0 0.0
        %2180 = vmatpush1.msra.mxu0 0.0
        %2181 = vmatprep.mubr.f32.mxu0 0.0
        %2182 = vmatmul.mubr.f32.gmra.mrb[0].mxu0 %v2115
        %v2183 = vpop.f32.mrb[0].mxu0
        %v2184 = vadd.f32 0.0, %v2183
        %v2185 = vpop.f32.mrb[0].mxu0
        %2186 = vdwg.mxu0
        %v2188 = vrot.slane %v2184, 2
        %v2190 = vadd.f32 %v1493, %v2188
        %v2191 = vmul.f32 %v2190, %v567
        %v2192 = vtanh.pop %v2191
        %v2193 = vmul.f32 %v2192, %v567
        %v2194 = vadd.f32 %v2193, %v568
        %v2196 = vrot.slane %v2104, 7
        %v2198 = vmul.f32 %v2194, %v2196
        %2200 = vrot.lane.b32.xlu0 %v2194, 64
        %v2201 = vpop.permute.xlu0 %2200
        %v2203 = vmul.f32 %v2194, %v2201
        %2205 = vrot.lane.b32.xlu0 %v2203, 32
        %v2206 = vpop.permute.xlu0 %2205
        %v2208 = vadd.f32 %v2198, %v2206
        %v2209 = vtanh.pop %v2208
        %2211 = vrot.lane.b32.xlu0 %v2209, 64
        %v2212 = vpop.permute.xlu0 %2211
        %v2214 = vmul.f32 %v2194, %v2212
        %v2216 = vrot.slane %v2214, 6
        %2217 = vrot.lane.b32.xlu0 %v2216, 32
        %v2218 = vpop.permute.xlu0 %2217
        %v2219 = vsel %vm573, %v2218, 0
        %2221 = vmatprep.subr.mxu0 0.0
        %2222 = vmatpush1.msra.mxu0 %v1496
        %2223 = vmatprep.subr.mxu0 0.0
        %2224 = vmatpush1.msra.mxu0 %v1497
        %2225 = vmatprep.subr.mxu0 0.0
        %2226 = vmatpush1.msra.mxu0 %v1498
        %2227 = vmatprep.subr.mxu0 0.0
        %2228 = vmatpush1.msra.mxu0 %v1499
        %2229 = vmatprep.subr.mxu0 0.0
        %2230 = vmatpush1.msra.mxu0 0.0
        %2231 = vmatprep.subr.mxu0 0.0
        %2232 = vmatpush1.msra.mxu0 0.0
        %2233 = vmatprep.subr.mxu0 0.0
        %2234 = vmatpush1.msra.mxu0 0.0
        %2235 = vmatprep.subr.mxu0 0.0
        %2236 = vmatpush1.msra.mxu0 0.0
        %2237 = vmatprep.subr.mxu0 0.0
        %2238 = vmatpush1.msra.mxu0 0.0
        %2239 = vmatprep.subr.mxu0 0.0
        %2240 = vmatpush1.msra.mxu0 0.0
        %2241 = vmatprep.subr.mxu0 0.0
        %2242 = vmatpush1.msra.mxu0 0.0
        %2243 = vmatprep.subr.mxu0 0.0
        %2244 = vmatpush1.msra.mxu0 0.0
        %2245 = vmatprep.subr.mxu0 0.0
        %2246 = vmatpush1.msra.mxu0 0.0
        %2247 = vmatprep.subr.mxu0 0.0
        %2248 = vmatpush1.msra.mxu0 0.0
        %2249 = vmatprep.subr.mxu0 0.0
        %2250 = vmatpush1.msra.mxu0 0.0
        %2251 = vmatprep.subr.mxu0 0.0
        %2252 = vmatpush1.msra.mxu0 0.0
        %2253 = vmatprep.subr.mxu0 0.0
        %2254 = vmatpush1.msra.mxu0 0.0
        %2255 = vmatprep.subr.mxu0 0.0
        %2256 = vmatpush1.msra.mxu0 0.0
        %2257 = vmatprep.subr.mxu0 0.0
        %2258 = vmatpush1.msra.mxu0 0.0
        %2259 = vmatprep.subr.mxu0 0.0
        %2260 = vmatpush1.msra.mxu0 0.0
        %2261 = vmatprep.subr.mxu0 0.0
        %2262 = vmatpush1.msra.mxu0 0.0
        %2263 = vmatprep.subr.mxu0 0.0
        %2264 = vmatpush1.msra.mxu0 0.0
        %2265 = vmatprep.subr.mxu0 0.0
        %2266 = vmatpush1.msra.mxu0 0.0
        %2267 = vmatprep.subr.mxu0 0.0
        %2268 = vmatpush1.msra.mxu0 0.0
        %2269 = vmatprep.subr.mxu0 0.0
        %2270 = vmatpush1.msra.mxu0 0.0
        %2271 = vmatprep.subr.mxu0 0.0
        %2272 = vmatpush1.msra.mxu0 0.0
        %2273 = vmatprep.subr.mxu0 0.0
        %2274 = vmatpush1.msra.mxu0 0.0
        %2275 = vmatprep.subr.mxu0 0.0
        %2276 = vmatpush1.msra.mxu0 0.0
        %2277 = vmatprep.subr.mxu0 0.0
        %2278 = vmatpush1.msra.mxu0 0.0
        %2279 = vmatprep.subr.mxu0 0.0
        %2280 = vmatpush1.msra.mxu0 0.0
        %2281 = vmatprep.subr.mxu0 0.0
        %2282 = vmatpush1.msra.mxu0 0.0
        %2283 = vmatprep.subr.mxu0 0.0
        %2284 = vmatpush1.msra.mxu0 0.0
        %2285 = vmatprep.mubr.f32.mxu0 0.0
        %2286 = vmatmul.mubr.f32.gmra.mrb[0].mxu0 %v2219
        %v2287 = vpop.f32.mrb[0].mxu0
        %v2288 = vadd.f32 0.0, %v2287
        %v2289 = vpop.f32.mrb[0].mxu0
        %2290 = vdwg.mxu0
        %v2292 = vrot.slane %v2288, 1
        %v2294 = vadd.f32 %v1493, %v2292
        %v2295 = vmul.f32 %v2294, %v567
        %v2296 = vtanh.pop %v2295
        %v2297 = vmul.f32 %v2296, %v567
        %v2298 = vadd.f32 %v2297, %v568
        %v2300 = vrot.slane %v2208, 7
        %v2302 = vmul.f32 %v2298, %v2300
        %2304 = vrot.lane.b32.xlu0 %v2298, 64
        %v2305 = vpop.permute.xlu0 %2304
        %v2307 = vmul.f32 %v2298, %v2305
        %2309 = vrot.lane.b32.xlu0 %v2307, 32
        %v2310 = vpop.permute.xlu0 %2309
        %v2312 = vadd.f32 %v2302, %v2310
        %v2313 = vtanh.pop %v2312
        %2315 = vrot.lane.b32.xlu0 %v2313, 64
        %v2316 = vpop.permute.xlu0 %2315
        %v2318 = vmul.f32 %v2298, %v2316
        %v2319 = vsel %vm1396, %v1591, %v1694
        %v2320 = vsel %vm1398, %v2319, %v1798
        %v2321 = vsel %vm1400, %v2320, %v1902
        %v2322 = vsel %vm1402, %v2321, %v2006
        %v2323 = vsel %vm1404, %v2322, %v2110
        %v2324 = vsel %vm1406, %v2323, %v2214
        %v2325 = vsel %vm1408, %v2324, %v2318
        %v2326 = vld [vmem:[#allocation8] sm:$0xff]
        %v2327 = vld [vmem:[#allocation8 + $0x8] sm:$0xff]
        %v2328 = vld [vmem:[#allocation8 + $0x10] sm:$0xff]
        %v2329 = vld [vmem:[#allocation8 + $0x18] sm:$0xff]
        %v2330 = vld [vmem:[%s8] sm:$0x1]
        %v2332 = vlaneseq
        %v2333 = vshrl.u32 %v2332, 7
        %v2334 = vsub.s32 0, %v2333
        %v2335 = vrot.slane %v2330, %v2334
        %2338 = vrot.lane.b32.xlu0 %v2325, 32
        %v2339 = vpop.permute.xlu0 %2338
        %v2340 = vsel %vm573, %v2339, 0
        %2342 = vmatprep.subr.mxu0 0.0
        %2343 = vmatpush1.msra.mxu0 %v2326
        %2344 = vmatprep.subr.mxu0 0.0
        %2345 = vmatpush1.msra.mxu0 %v2327
        %2346 = vmatprep.subr.mxu0 0.0
        %2347 = vmatpush1.msra.mxu0 %v2328
        %2348 = vmatprep.subr.mxu0 0.0
        %2349 = vmatpush1.msra.mxu0 %v2329
        %2350 = vmatprep.subr.mxu0 0.0
        %2351 = vmatpush1.msra.mxu0 0.0
        %2352 = vmatprep.subr.mxu0 0.0
        %2353 = vmatpush1.msra.mxu0 0.0
        %2354 = vmatprep.subr.mxu0 0.0
        %2355 = vmatpush1.msra.mxu0 0.0
        %2356 = vmatprep.subr.mxu0 0.0
        %2357 = vmatpush1.msra.mxu0 0.0
        %2358 = vmatprep.subr.mxu0 0.0
        %2359 = vmatpush1.msra.mxu0 0.0
        %2360 = vmatprep.subr.mxu0 0.0
        %2361 = vmatpush1.msra.mxu0 0.0
        %2362 = vmatprep.subr.mxu0 0.0
        %2363 = vmatpush1.msra.mxu0 0.0
        %2364 = vmatprep.subr.mxu0 0.0
        %2365 = vmatpush1.msra.mxu0 0.0
        %2366 = vmatprep.subr.mxu0 0.0
        %2367 = vmatpush1.msra.mxu0 0.0
        %2368 = vmatprep.subr.mxu0 0.0
        %2369 = vmatpush1.msra.mxu0 0.0
        %2370 = vmatprep.subr.mxu0 0.0
        %2371 = vmatpush1.msra.mxu0 0.0
        %2372 = vmatprep.subr.mxu0 0.0
        %2373 = vmatpush1.msra.mxu0 0.0
        %2374 = vmatprep.subr.mxu0 0.0
        %2375 = vmatpush1.msra.mxu0 0.0
        %2376 = vmatprep.subr.mxu0 0.0
        %2377 = vmatpush1.msra.mxu0 0.0
        %2378 = vmatprep.subr.mxu0 0.0
        %2379 = vmatpush1.msra.mxu0 0.0
        %2380 = vmatprep.subr.mxu0 0.0
        %2381 = vmatpush1.msra.mxu0 0.0
        %2382 = vmatprep.subr.mxu0 0.0
        %2383 = vmatpush1.msra.mxu0 0.0
        %2384 = vmatprep.subr.mxu0 0.0
        %2385 = vmatpush1.msra.mxu0 0.0
        %2386 = vmatprep.subr.mxu0 0.0
        %2387 = vmatpush1.msra.mxu0 0.0
        %2388 = vmatprep.subr.mxu0 0.0
        %2389 = vmatpush1.msra.mxu0 0.0
        %2390 = vmatprep.subr.mxu0 0.0
        %2391 = vmatpush1.msra.mxu0 0.0
        %2392 = vmatprep.subr.mxu0 0.0
        %2393 = vmatpush1.msra.mxu0 0.0
        %2394 = vmatprep.subr.mxu0 0.0
        %2395 = vmatpush1.msra.mxu0 0.0
        %2396 = vmatprep.subr.mxu0 0.0
        %2397 = vmatpush1.msra.mxu0 0.0
        %2398 = vmatprep.subr.mxu0 0.0
        %2399 = vmatpush1.msra.mxu0 0.0
        %2400 = vmatprep.subr.mxu0 0.0
        %2401 = vmatpush1.msra.mxu0 0.0
        %2402 = vmatprep.subr.mxu0 0.0
        %2403 = vmatpush1.msra.mxu0 0.0
        %2404 = vmatprep.subr.mxu0 0.0
        %2405 = vmatpush1.msra.mxu0 0.0
        %2406 = vmatprep.mubr.f32.mxu0 0.0
        %2407 = vmatmul.mubr.f32.gmra.mrb[0].mxu0 %v2340
        %v2408 = vpop.f32.mrb[0].mxu0
        %v2409 = vadd.f32 %v2335, %v2408
        %v2410 = vpop.f32.mrb[0].mxu0
        %2411 = vdwg.mxu0
        %2412 = vst [vmem:[%s437] sm:$0xff] %v2409
        %v2414 = vrot.slane %v1395, 7
        %v2417 = vrot.slane %v2318, 6
        %v2419 = vsel %vm1396, %v2414, %v2417
        %2421 = vrot.lane.b32.xlu0 %v2419, 32
        %v2422 = vpop.permute.xlu0 %2421
        %vm2424 = vcmask 254976
        %2425 = vst.msk [vmem:[%s457] sm:$0x3] %vm2424, %v2422
        %v2427 = vrot.slane %v1389, 7
        %v2430 = vrot.slane %v2312, 6
        %v2432 = vsel %vm1396, %v2427, %v2430
        %2434 = vrot.lane.b32.xlu0 %v2432, 96
        %v2435 = vpop.permute.xlu0 %2434
        %2437 = vst.msk [vmem:[%s461] sm:$0x3] %vm2424, %v2435
        %s2438 = sand.u32 %s231, 1
        %s2439 = scalar_lea.sflag [#allocation4], %s2438
        %s2440 = sand.u32 %s231, 1
        %s2441 = smul.addr %s2440, 8
        %s2442 = scalar_lea.vmem [#allocation10], %s2441
        %p2443 = scmp.lt.s32.totalorder %s29, 1
        %s2444 = scalar_select %p2443, %s29, 1
        %s2445 = smul.addr %s2444, 2
        %s2446 = scalar_lea.vmem %s10, %s2445
        %p2447 = scmp.lt.s32.totalorder %s29, 1
        %s2448 = scalar_select %p2447, %s29, 1
        %s2449 = smul.addr %s2448, 2
        %s2450 = scalar_lea.vmem %s11, %s2449
        // Predicated region
        $region73: #{forward.1} parent=55 // pred_check
          %p2451 = pneg %p241
        $region74: #{forward.1} parent=55 // pred_check_branch
          %2453 = sbr.rel (%p2451) target = $region76
        $region75: #{forward.1} parent=55 // pred_region
          %s2455 = ssub.s32 128, 128
          %2456 = vsyncadd %s2439, %s2455
          %s2457 = smul.addr %s29, 128
          %s2458 = scalar_lea.hbm %s9, %s2457
          %s2460 = sshll.u32 %s2442, 4
          %s2461 = int_to_ptr.vmem [resolvable:$true] %s2460
          %2463 = dma.vmem_to_hbm [thread:$0]  %s2461, 128, %s2458, %s2439
        $region76: #{forward.1} parent=55 // pred_fallthru
          _
        // Predicated region
        $region77: #{forward.1} parent=55 // pred_check
          %p2464 = pneg %p267
        $region78: #{forward.1} parent=55 // pred_check_branch
          %2466 = sbr.rel (%p2464) target = $region80
        $region79: #{forward.1} parent=55 // pred_region
          _
        $region80: #{forward.1} parent=55 // pred_fallthru
          _
        // Predicated region
        $region81: #{forward.1} parent=55 // pred_check
          %p2467 = pneg %p293
        $region82: #{forward.1} parent=55 // pred_check_branch
          %2469 = sbr.rel (%p2467) target = $region84
        $region83: #{forward.1} parent=55 // pred_region
          _
        $region84: #{forward.1} parent=55 // pred_fallthru
          _
      $region56: #{forward.1} parent=5 // pred_fallthru
        _
      %p2470 = scmp.le.s32.totalorder 2, %s24
      // Predicated region
      $region85: #{forward.1} parent=5 // pred_check
        %p2471 = pneg %p2470
      $region86: #{forward.1} parent=5 // pred_check_branch
        %2473 = sbr.rel (%p2471) target = $region88
      $region87: #{forward.1} parent=5 // pred_region
        %s2474 = ssub.s32 %s24, 2
        // Predicated region
        $region89: #{forward.1} parent=87 // pred_check
          %p2475 = pneg %p247
        $region90: #{forward.1} parent=87 // pred_check_branch
          %2477 = sbr.rel (%p2475) target = $region92
        $region91: #{forward.1} parent=87 // pred_region
          %s2478 = sand.u32 %s232, 1
          %s2479 = scalar_lea.sflag [#allocation4], %s2478
          %s2480 = sand.u32 %s232, 1
          %s2481 = smul.addr %s2480, 8
          %s2482 = scalar_lea.vmem [#allocation10], %s2481
          %2483 = dma.done %s2479, 128
        $region92: #{forward.1} parent=87 // pred_fallthru
          _
        // Predicated region
        $region93: #{forward.1} parent=87 // pred_check
          %p2484 = pneg %p273
        $region94: #{forward.1} parent=87 // pred_check_branch
          %2486 = sbr.rel (%p2484) target = $region96
        $region95: #{forward.1} parent=87 // pred_region
          %p2487 = scmp.lt.s32.totalorder %s30, 1
          %s2488 = scalar_select %p2487, %s30, 1
          %s2489 = smul.addr %s2488, 2
          %s2490 = scalar_lea.vmem %s10, %s2489
        $region96: #{forward.1} parent=87 // pred_fallthru
          _
        // Predicated region
        $region97: #{forward.1} parent=87 // pred_check
          %p2491 = pneg %p299
        $region98: #{forward.1} parent=87 // pred_check_branch
          %2493 = sbr.rel (%p2491) target = $region100
        $region99: #{forward.1} parent=87 // pred_region
          %p2494 = scmp.lt.s32.totalorder %s30, 1
          %s2495 = scalar_select %p2494, %s30, 1
          %s2496 = smul.addr %s2495, 2
          %s2497 = scalar_lea.vmem %s11, %s2496
        $region100: #{forward.1} parent=87 // pred_fallthru
          _
      $region88: #{forward.1} parent=5 // pred_fallthru
        _
    $region6: #{forward.1} parent=1 // loop_footer
      %s28 = sadd.s32 1, %s24
    $region7: #{forward.1} parent=1 // loop_footer_branch
      %23 = sbr.rel target = $region3
    $region8: #{forward.1} parent=1 // loop_exit
      _
    %2498 = vsyncpa [#allocation3], 1
    %s2499 = scalar_lea.sflag [#allocation3], 1
    %2500 = vsyncpa %s2499, 1
    %2501 = vsyncpa [#allocation6], 1
    %2502 = vsyncpa [#allocation9], 1
    %2503 = vsyncpa [#allocation4], 1
    %s2504 = scalar_lea.sflag [#allocation4], 1
    %2505 = vsyncpa %s2504, 1

</llo_original>
